<compile_context>
chip_gen: v7x
topology: tpu7x:2x2x1
jax: 0.10.0
libtpu: 0.0.40
codegen_flags: <defaults>
</compile_context>

<pallas_src>
import numpy as np
import jax
import jax.numpy as jnp
from jax.experimental import pallas as pl
from jax.experimental.pallas import tpu as pltpu

# ----------------------------- configuration ------------------------------
NUM_BODY_JOINTS = 21
NUM_HAND_JOINTS = 15
NUM_JOINTS = 1 + NUM_BODY_JOINTS + 2 * NUM_HAND_JOINTS          # 52
NUM_BETAS = 10
NUM_VERTS = 256          # real SMPL-H has 6890 verts; small for this demo
POSE_FEAT = (NUM_JOINTS - 1) * 9                                 # 459

SUBLANE = 8              # batch is padded to a full sublane group

# Vertex tile on the lane axis.  1024 lanes keeps the double-buffered working
# set (pdirs bf16 + sdirs + w_t + verts) at ~7 MB, which fits the *default*
# scoped VMEM on every generation (16 MiB v5e, 32 MiB v6e/v7x) while reaching
# ~85% of HBM roofline.  Raise to 2048 (and set vmem_limit_bytes) only if the
# pdirs DMA is still exposed; do NOT go to 8k-16k lanes (blows v7x's 64 MiB).
TILE_V = 1024

HP = jax.lax.Precision.HIGHEST   # for tiny plain-JAX glue matmuls only

# SMPL-H kinematic tree (22 body joints + 15 left-hand + 15 right-hand)
PARENTS = [-1, 0, 0, 0, 1, 2, 3, 4, 5, 6, 7, 8, 9, 9, 9, 12, 13, 14,
           16, 17, 18, 19,
           20, 22, 23, 20, 25, 26, 20, 28, 29, 20, 31, 32, 20, 34, 35,
           21, 37, 38, 21, 40, 41, 21, 43, 44, 21, 46, 47, 21, 49, 50]
assert len(PARENTS) == NUM_JOINTS


def _compute_levels(parents):
    """Group joint indices by tree depth (for level-batched chain matmuls)."""
    depth = [0] * len(parents)
    for i in range(1, len(parents)):
        depth[i] = depth[parents[i]] + 1
    levels = []
    for d in range(1, max(depth) + 1):
        levels.append(np.asarray(
            [i for i in range(len(parents)) if depth[i] == d], dtype=np.int32))
    return levels


LEVELS = _compute_levels(PARENTS)     # 10 levels for SMPL-H


# ------------------------------ Pallas kernel ------------------------------
def _lbs_fused_kernel(betas_ref, pfeat_ref, a_ref, vtemp_ref, sdirs_ref,
                      pdirs_ref, w_t_ref, verts_ref):
    # betas : (Bp, NB)      f32
    # pfeat : (Bp, P)       bf16  pose feature (rot - I flattened, batch padded)
    # a     : (12*Bp, J)    f32   rows (4k+c)*Bp + b of the relative 4x4
    #                             transforms; transl folded into the c=3 rows
    # vtemp : (3, TV)       f32   v_template, coord-major vertex tile
    # sdirs : (3, NB, TV)   f32   shape blendshape dirs
    # pdirs : (3, P, TV)    bf16  pose blendshape dirs (dominant HBM stream)
    # w_t   : (J, TV)       f32   lbs_weights^T vertex tile
    # verts : (3, Bp, TV)   f32   output (lane-dense slab)
    betas = betas_ref[...]
    pfeat = pfeat_ref[...]
    bp = betas.shape[0]

    # Blended per-vertex transform rows: one (12*Bp, J) @ (J, TV) MXU dot.
    t = jnp.dot(a_ref[...], w_t_ref[...], preferred_element_type=jnp.float32)

    # Posed vertices (shape + pose blendshapes), one (Bp, TV) plane per coord.
    vp = []
    for k in range(3):                                    # static unroll
        vp.append(
            vtemp_ref[k:k + 1, :]
            + jnp.dot(betas, sdirs_ref[k], preferred_element_type=jnp.float32)
            + jnp.dot(pfeat, pdirs_ref[k], preferred_element_type=jnp.float32))

    # Skinning: the homogeneous input coordinate is exactly 1, so the output
    # w-row is never needed (matches the reference's [..., :3]).
    for k in range(3):                                    # static unroll
        base = 4 * k * bp
        t0 = t[base + 0 * bp: base + 1 * bp]
        t1 = t[base + 1 * bp: base + 2 * bp]
        t2 = t[base + 2 * bp: base + 3 * bp]
        t3 = t[base + 3 * bp: base + 4 * bp]
        verts_ref[k] = t0 * vp[0] + t1 * vp[1] + t2 * vp[2] + t3


# ---------------------------- pallas_call wrapper ---------------------------
def lbs_fused_pallas(betas_p, pfeat_p, a_flat, vtemp_cm, sdirs_cm, pdirs_cm,
                     w_t, *, tile_v):
    bp, nb = betas_p.shape
    p = pfeat_p.shape[1]
    v_pad = vtemp_cm.shape[1]
    j = w_t.shape[0]
    rows = a_flat.shape[0]                  # 12 * Bp
    assert v_pad % tile_v == 0
    n_tiles = v_pad // tile_v
    return pl.pallas_call(
        _lbs_fused_kernel,
        out_shape=jax.ShapeDtypeStruct((3, bp, v_pad), jnp.float32),
        grid=(n_tiles,),
        in_specs=[
            pl.BlockSpec((bp, nb), lambda v: (0, 0)),
            pl.BlockSpec((bp, p), lambda v: (0, 0)),
            pl.BlockSpec((rows, j), lambda v: (0, 0)),
            pl.BlockSpec((3, tile_v), lambda v: (0, v)),
            pl.BlockSpec((3, nb, tile_v), lambda v: (0, 0, v)),
            pl.BlockSpec((3, p, tile_v), lambda v: (0, 0, v)),
            pl.BlockSpec((j, tile_v), lambda v: (0, v)),
        ],
        out_specs=pl.BlockSpec((3, bp, tile_v), lambda v: (0, 0, v)),
        # No cross-tile accumulator anymore -> vertex axis is fully parallel
        # (splits across both TensorCores on v7x).
        compiler_params=pltpu.CompilerParams(
            dimension_semantics=("parallel",)),
    )(betas_p, pfeat_p, a_flat, vtemp_cm, sdirs_cm, pdirs_cm, w_t)


# ------------------------------ plain-JAX glue ------------------------------
def batch_rodrigues(rot_vecs):
    """(N, 3) axis-angle -> (N, 3, 3) rotation matrices (smplx convention)."""
    eps = 1e-8
    angle = jnp.linalg.norm(rot_vecs + eps, axis=1, keepdims=True)    # (N, 1)
    rot_dir = rot_vecs / angle
    cos = jnp.cos(angle)[:, None, :]                                  # (N,1,1)
    sin = jnp.sin(angle)[:, None, :]
    rx, ry, rz = rot_dir[:, 0], rot_dir[:, 1], rot_dir[:, 2]
    zeros = jnp.zeros_like(rx)
    K = jnp.stack([zeros, -rz, ry, rz, zeros, -rx, -ry, rx, zeros],
                  axis=1).reshape(-1, 3, 3)
    ident = jnp.eye(3, dtype=rot_vecs.dtype)[None]
    return ident + sin * K + (1.0 - cos) * jnp.matmul(K, K, precision=HP)


def batch_rigid_transform(rot_mats, joints, parents):
    """rot_mats (B,J,3,3), joints (B,J,3) -> posed joints, relative 4x4.

    The kinematic chain is evaluated level-batched (one batched 4x4 matmul per
    tree depth, ~10 levels) instead of 51 sequential matmuls.
    """
    B, J = joints.shape[:2]
    joints_e = joints[..., None]                                      # (B,J,3,1)
    parent_idx = np.asarray(parents[1:])
    rel_joints = jnp.concatenate(
        [joints_e[:, :1], joints_e[:, 1:] - joints_e[:, parent_idx]], axis=1)
    top = jnp.concatenate([rot_mats, rel_joints], axis=-1)            # (B,J,3,4)
    bottom = jnp.broadcast_to(
        jnp.array([0.0, 0.0, 0.0, 1.0], dtype=rot_mats.dtype), (B, J, 1, 4))
    tmats = jnp.concatenate([top, bottom], axis=2)                    # (B,J,4,4)

    transforms = tmats                       # root (depth 0) is already global
    for idx in LEVELS:
        par = np.asarray([parents[i] for i in idx])
        new = jnp.einsum('bnij,bnjk->bnik', transforms[:, par], tmats[:, idx],
                         precision=HP)
        transforms = transforms.at[:, idx].set(new)

    posed_joints = transforms[:, :, :3, 3]
    joints_h = jnp.concatenate(
        [joints_e, jnp.zeros((B, J, 1, 1), dtype=joints.dtype)], axis=2)
    init_bone = jnp.matmul(transforms, joints_h, precision=HP)        # (B,J,4,1)
    init_bone = jnp.pad(init_bone, ((0, 0), (0, 0), (0, 0), (3, 0)))
    rel_transforms = transforms - init_bone
    return posed_joints, rel_transforms


# ------------------------------ the body model ------------------------------
class BodyModelSMPLH:
    """JAX/Pallas re-implementation of BodyModelSMPLH (use_pca=False,
    flat_hand_mean=False), with deterministic synthetic parameters."""

    def __init__(self, key):
        keys = jax.random.split(key, 6)
        V, J = NUM_VERTS, NUM_JOINTS
        self.num_betas = NUM_BETAS
        self.use_pca = False
        self.hand_pose_dim = 3 * NUM_HAND_JOINTS          # 45 (no PCA)

        self.v_template = 0.1 * jax.random.normal(keys[0], (V, 3), jnp.float32)
        self.shapedirs = 0.01 * jax.random.normal(
            keys[1], (V, 3, NUM_BETAS), jnp.float32)
        self.posedirs = 0.001 * jax.random.normal(
            keys[2], (POSE_FEAT, V * 3), jnp.float32)
        jr = jax.random.uniform(keys[3], (J, V), jnp.float32)
        self.J_regressor = jr / jnp.sum(jr, axis=1, keepdims=True)
        w = jax.random.uniform(keys[4], (V, J), jnp.float32)
        self.lbs_weights = w / jnp.sum(w, axis=1, keepdims=True)  # rows sum to 1
        hands_mean = 0.1 * jnp.sin(
            0.1 * jnp.arange(2 * 3 * NUM_HAND_JOINTS, dtype=jnp.float32))
        self.pose_mean = jnp.concatenate(
            [jnp.zeros(3 + 3 * NUM_BODY_JOINTS, jnp.float32), hands_mean])
        self.parents = PARENTS

        # ---- J_regressor folded into constants (everything is linear) ------
        self.j_template = jnp.einsum('jv,vk->jk', self.J_regressor,
                                     self.v_template, precision=HP)     # (J,3)
        self.j_shapedirs = jnp.einsum('jv,vkl->jkl', self.J_regressor,
                                      self.shapedirs, precision=HP)     # (J,3,NB)

        # -------- kernel-layout parameters (coord-major, vertices on lanes) --
        self.tile_v = min(TILE_V, max(128, ((V + 127) // 128) * 128))
        self.v_pad = pl.cdiv(V, self.tile_v) * self.tile_v
        pv = self.v_pad - V

        self.v_template_cm = jnp.pad(self.v_template.T, ((0, 0), (0, pv)))
        self.shapedirs_cm = jnp.pad(
            jnp.transpose(self.shapedirs, (1, 2, 0)), ((0, 0), (0, 0), (0, pv)))
        # posedirs is the dominant HBM stream -> store bf16, coord-major.
        pdirs = jnp.transpose(self.posedirs.reshape(POSE_FEAT, V, 3), (2, 0, 1))
        self.posedirs_cm = jnp.pad(
            pdirs, ((0, 0), (0, 0), (0, pv))).astype(jnp.bfloat16)     # (3,P,Vp)
        self.lbs_w_t = jnp.pad(self.lbs_weights.T, ((0, 0), (0, pv)))  # (J, Vp)

    def forward(self, betas=None, global_orient=None, transl=None,
                body_pose=None, left_hand_pose=None, right_hand_pose=None,
                **kwargs):
        dtype = jnp.float32
        model_vars = [betas, global_orient, body_pose, transl,
                      left_hand_pose, right_hand_pose]
        batch_size = 1
        for var in model_vars:
            if var is None:
                continue
            batch_size = max(batch_size, var.shape[0])
        B = batch_size

        if global_orient is None:
            global_orient = jnp.zeros((B, 3), dtype)
        if body_pose is None:
            body_pose = jnp.zeros((B, 3 * NUM_BODY_JOINTS), dtype)
        if left_hand_pose is None:
            left_hand_pose = jnp.zeros((B, self.hand_pose_dim), dtype)
        if right_hand_pose is None:
            right_hand_pose = jnp.zeros((B, self.hand_pose_dim), dtype)
        if betas is None:
            betas = jnp.zeros((B, self.num_betas), dtype)
        if transl is None:
            transl = jnp.zeros((B, 3), dtype)

        full_pose = jnp.concatenate(
            [global_orient, body_pose, left_hand_pose, right_hand_pose], axis=1)
        full_pose = full_pose + self.pose_mean[None]

        rot_mats = batch_rodrigues(full_pose.reshape(-1, 3)).reshape(
            B, NUM_JOINTS, 3, 3)
        ident = jnp.eye(3, dtype=dtype)
        pose_feature = (rot_mats[:, 1:] - ident).reshape(B, POSE_FEAT)

        # Rest-pose joints directly from betas via the folded regressor
        # constants (tiny plain-JAX einsum; no HBM vertex stream needed).
        joints = self.j_template[None] + jnp.einsum(
            'bl,jkl->bjk', betas, self.j_shapedirs, precision=HP)     # (B,J,3)

        # Kinematic chain (level-batched over tree depth) -- available BEFORE
        # the Pallas launch, so blendshapes + skinning fuse into one kernel.
        j_transformed, a_rel = batch_rigid_transform(rot_mats, joints,
                                                     self.parents)

        # Rows 0..11 of the relative 4x4s laid out (4k+c, b, j); transl folded
        # into the translation rows (valid: lbs weight rows sum to 1).
        bp = ((B + SUBLANE - 1) // SUBLANE) * SUBLANE
        trans_fold = jnp.zeros((3, 4, B, 1), dtype).at[:, 3, :, 0].set(transl.T)
        a12 = (jnp.transpose(a_rel[:, :, :3, :], (2, 3, 0, 1))
               + trans_fold).reshape(12, B, NUM_JOINTS)
        a12 = jnp.pad(a12, ((0, 0), (0, bp - B), (0, 0)))
        a_flat = a12.reshape(12 * bp, NUM_JOINTS)                     # (12Bp, J)

        betas_p = jnp.pad(betas, ((0, bp - B), (0, 0)))
        pfeat_p = jnp.pad(pose_feature,
                          ((0, bp - B), (0, 0))).astype(jnp.bfloat16)

        # Single fused Pallas kernel: shape + pose blendshapes + skinning,
        # tiled over the vertex lane axis (vposed never leaves VMEM).
        verts_cm = lbs_fused_pallas(
            betas_p, pfeat_p, a_flat, self.v_template_cm, self.shapedirs_cm,
            self.posedirs_cm, self.lbs_w_t, tile_v=self.tile_v)

        vertices = jnp.transpose(verts_cm[:, :B, :NUM_VERTS], (1, 2, 0))

        # TODO(synk): smplx VertexJointSelector (fingertip vertex joints) and
        # joint_mapper are omitted in this synthetic model.
        joints_out = j_transformed + transl[:, None, :]
        return {'vertices': vertices, 'joints': joints_out,
                'full_pose': full_pose, 'betas': betas}


# ------------------------ pure-JAX reference (check) ------------------------
def reference_lbs(model, betas, pose_feature, rot_mats, transl):
    hp = HP
    B = betas.shape[0]
    vshaped = model.v_template[None] + jnp.einsum(
        'bl,vkl->bvk', betas, model.shapedirs, precision=hp)
    joints = jnp.einsum('jv,bvk->bjk', model.J_regressor, vshaped, precision=hp)
    vposed = vshaped + jnp.einsum(
        'bp,pn->bn', pose_feature, model.posedirs,
        precision=hp).reshape(B, NUM_VERTS, 3)
    j_t, a_rel = batch_rigid_transform(rot_mats, joints, model.parents)
    T = jnp.einsum('vj,bjmn->bvmn', model.lbs_weights, a_rel, precision=hp)
    vp_h = jnp.concatenate(
        [vposed, jnp.ones(vposed.shape[:2] + (1,), vposed.dtype)], axis=-1)
    verts = jnp.einsum('bvmn,bvn->bvm', T, vp_h, precision=hp)[..., :3]
    return verts + transl[:, None], j_t + transl[:, None]


# ----------------------------------- main -----------------------------------
if __name__ == "__main__":
    key = jax.random.PRNGKey(0)
    k_model, k_in = jax.random.split(key)
    model = BodyModelSMPLH(k_model)

    B = 2
    ks = jax.random.split(k_in, 6)
    betas = 0.5 * jax.random.normal(ks[0], (B, NUM_BETAS), jnp.float32)
    global_orient = 0.5 * jax.random.normal(ks[1], (B, 3), jnp.float32)
    body_pose = 0.3 * jax.random.normal(ks[2], (B, 3 * NUM_BODY_JOINTS), jnp.float32)
    left_hand_pose = 0.2 * jax.random.normal(ks[3], (B, 3 * NUM_HAND_JOINTS), jnp.float32)
    right_hand_pose = 0.2 * jax.random.normal(ks[4], (B, 3 * NUM_HAND_JOINTS), jnp.float32)
    transl = 0.5 * jax.random.normal(ks[5], (B, 3), jnp.float32)

    out = model.forward(betas=betas, global_orient=global_orient, transl=transl,
                        body_pose=body_pose, left_hand_pose=left_hand_pose,
                        right_hand_pose=right_hand_pose)
    verts = jax.block_until_ready(out['vertices'])
    joints = jax.block_until_ready(out['joints'])

    # sanity-check against a pure-JAX high-precision reference
    full_pose = out['full_pose']
    rot_mats = batch_rodrigues(full_pose.reshape(-1, 3)).reshape(B, NUM_JOINTS, 3, 3)
    pose_feature = (rot_mats[:, 1:] - jnp.eye(3, dtype=jnp.float32)).reshape(B, POSE_FEAT)
    ref_v, ref_j = reference_lbs(model, betas, pose_feature, rot_mats, transl)

    assert verts.shape == (B, NUM_VERTS, 3) and joints.shape == (B, NUM_JOINTS, 3)
    np.testing.assert_allclose(np.asarray(verts), np.asarray(ref_v),
                               rtol=3e-3, atol=3e-3)
    np.testing.assert_allclose(np.asarray(joints), np.asarray(ref_j),
                               rtol=3e-3, atol=3e-3)
    print("KERNEL_OK")
</pallas_src>

<mosaic_0001>
module attributes {stable_mosaic.version = 11 : i64} {
  func.func @_lbs_fused_kernel(%arg0: i32, %arg1: memref<8x10xf32, #tpu.memory_space<vmem>>, %arg2: memref<8x459xbf16, #tpu.memory_space<vmem>>, %arg3: memref<96x52xf32, #tpu.memory_space<vmem>>, %arg4: memref<3x256xf32, #tpu.memory_space<vmem>>, %arg5: memref<3x10x256xf32, #tpu.memory_space<vmem>>, %arg6: memref<3x459x256xbf16, #tpu.memory_space<vmem>>, %arg7: memref<52x256xf32, #tpu.memory_space<vmem>>, %arg8: memref<3x8x256xf32, #tpu.memory_space<vmem>>) attributes {dimension_semantics = [#tpu.dimension_semantics<parallel>], iteration_bounds = array<i64: 1>, scalar_prefetch = 0 : i64, scratch_operands = 0 : i64, tpu.core_type = #tpu.core_type<tc>, window_params = [{pipeline_mode = #tpu.pipeline_mode<synchronous>, transform_indices = @transform_0, window_bounds = array<i64: 8, 10>}, {pipeline_mode = #tpu.pipeline_mode<synchronous>, transform_indices = @transform_1, window_bounds = array<i64: 8, 459>}, {pipeline_mode = #tpu.pipeline_mode<synchronous>, transform_indices = @transform_2, window_bounds = array<i64: 96, 52>}, {transform_indices = @transform_3, window_bounds = array<i64: 3, 256>}, {transform_indices = @transform_4, window_bounds = array<i64: 3, 10, 256>}, {transform_indices = @transform_5, window_bounds = array<i64: 3, 459, 256>}, {transform_indices = @transform_6, window_bounds = array<i64: 52, 256>}, {transform_indices = @transform_7, window_bounds = array<i64: 3, 8, 256>}]} {
    %c0 = arith.constant 0 : index
    %c0_0 = arith.constant 0 : index
    %0 = vector.load %arg1[%c0, %c0_0] : memref<8x10xf32, #tpu.memory_space<vmem>>, vector<8x10xf32>
    %c0_1 = arith.constant 0 : index
    %c0_2 = arith.constant 0 : index
    %1 = vector.load %arg2[%c0_1, %c0_2] : memref<8x459xbf16, #tpu.memory_space<vmem>>, vector<8x459xbf16>
    %c0_3 = arith.constant 0 : index
    %c0_4 = arith.constant 0 : index
    %2 = vector.load %arg3[%c0_3, %c0_4] : memref<96x52xf32, #tpu.memory_space<vmem>>, vector<96x52xf32>
    %c0_5 = arith.constant 0 : index
    %c0_6 = arith.constant 0 : index
    %3 = vector.load %arg7[%c0_5, %c0_6] : memref<52x256xf32, #tpu.memory_space<vmem>>, vector<52x256xf32>
    %cst = arith.constant dense<0.000000e+00> : vector<96x256xf32>
    %4 = tpu.matmul %2, %3, %cst {dimension_numbers = #tpu.dot_dimension_numbers<[1], [0], [0], [1], [0, 0, 1, 1], [], []>} : vector<96x52xf32>, vector<52x256xf32>, vector<96x256xf32> -> vector<96x256xf32>
    %c0_7 = arith.constant 0 : index
    %c0_8 = arith.constant 0 : index
    %5 = vector.load %arg4[%c0_7, %c0_8] : memref<3x256xf32, #tpu.memory_space<vmem>>, vector<1x256xf32>
    %c0_9 = arith.constant 0 : index
    %c0_10 = arith.constant 0 : index
    %c0_11 = arith.constant 0 : index
    %6 = vector.load %arg5[%c0_9, %c0_10, %c0_11] : memref<3x10x256xf32, #tpu.memory_space<vmem>>, vector<1x10x256xf32>
    %7 = vector.shape_cast %6 : vector<1x10x256xf32> to vector<10x256xf32>
    %cst_12 = arith.constant dense<0.000000e+00> : vector<8x256xf32>
    %8 = tpu.matmul %0, %7, %cst_12 {dimension_numbers = #tpu.dot_dimension_numbers<[1], [0], [0], [1], [0, 0, 1, 1], [], []>} : vector<8x10xf32>, vector<10x256xf32>, vector<8x256xf32> -> vector<8x256xf32>
    %9 = vector.broadcast %5 : vector<1x256xf32> to vector<8x256xf32>
    %10 = arith.addf %9, %8 : vector<8x256xf32>
    %c0_13 = arith.constant 0 : index
    %c0_14 = arith.constant 0 : index
    %c0_15 = arith.constant 0 : index
    %11 = vector.load %arg6[%c0_13, %c0_14, %c0_15] : memref<3x459x256xbf16, #tpu.memory_space<vmem>>, vector<1x459x256xbf16>
    %12 = vector.shape_cast %11 : vector<1x459x256xbf16> to vector<459x256xbf16>
    %cst_16 = arith.constant dense<0.000000e+00> : vector<8x256xf32>
    %13 = tpu.matmul %1, %12, %cst_16 {dimension_numbers = #tpu.dot_dimension_numbers<[1], [0], [0], [1], [0, 0, 1, 1], [], []>} : vector<8x459xbf16>, vector<459x256xbf16>, vector<8x256xf32> -> vector<8x256xf32>
    %14 = arith.addf %10, %13 : vector<8x256xf32>
    %c1 = arith.constant 1 : index
    %c0_17 = arith.constant 0 : index
    %15 = vector.load %arg4[%c1, %c0_17] : memref<3x256xf32, #tpu.memory_space<vmem>>, vector<1x256xf32>
    %c1_18 = arith.constant 1 : index
    %c0_19 = arith.constant 0 : index
    %c0_20 = arith.constant 0 : index
    %16 = vector.load %arg5[%c1_18, %c0_19, %c0_20] : memref<3x10x256xf32, #tpu.memory_space<vmem>>, vector<1x10x256xf32>
    %17 = vector.shape_cast %16 : vector<1x10x256xf32> to vector<10x256xf32>
    %cst_21 = arith.constant dense<0.000000e+00> : vector<8x256xf32>
    %18 = tpu.matmul %0, %17, %cst_21 {dimension_numbers = #tpu.dot_dimension_numbers<[1], [0], [0], [1], [0, 0, 1, 1], [], []>} : vector<8x10xf32>, vector<10x256xf32>, vector<8x256xf32> -> vector<8x256xf32>
    %19 = vector.broadcast %15 : vector<1x256xf32> to vector<8x256xf32>
    %20 = arith.addf %19, %18 : vector<8x256xf32>
    %c1_22 = arith.constant 1 : index
    %c0_23 = arith.constant 0 : index
    %c0_24 = arith.constant 0 : index
    %21 = vector.load %arg6[%c1_22, %c0_23, %c0_24] : memref<3x459x256xbf16, #tpu.memory_space<vmem>>, vector<1x459x256xbf16>
    %22 = vector.shape_cast %21 : vector<1x459x256xbf16> to vector<459x256xbf16>
    %cst_25 = arith.constant dense<0.000000e+00> : vector<8x256xf32>
    %23 = tpu.matmul %1, %22, %cst_25 {dimension_numbers = #tpu.dot_dimension_numbers<[1], [0], [0], [1], [0, 0, 1, 1], [], []>} : vector<8x459xbf16>, vector<459x256xbf16>, vector<8x256xf32> -> vector<8x256xf32>
    %24 = arith.addf %20, %23 : vector<8x256xf32>
    %c2 = arith.constant 2 : index
    %c0_26 = arith.constant 0 : index
    %25 = vector.load %arg4[%c2, %c0_26] : memref<3x256xf32, #tpu.memory_space<vmem>>, vector<1x256xf32>
    %c2_27 = arith.constant 2 : index
    %c0_28 = arith.constant 0 : index
    %c0_29 = arith.constant 0 : index
    %26 = vector.load %arg5[%c2_27, %c0_28, %c0_29] : memref<3x10x256xf32, #tpu.memory_space<vmem>>, vector<1x10x256xf32>
    %27 = vector.shape_cast %26 : vector<1x10x256xf32> to vector<10x256xf32>
    %cst_30 = arith.constant dense<0.000000e+00> : vector<8x256xf32>
    %28 = tpu.matmul %0, %27, %cst_30 {dimension_numbers = #tpu.dot_dimension_numbers<[1], [0], [0], [1], [0, 0, 1, 1], [], []>} : vector<8x10xf32>, vector<10x256xf32>, vector<8x256xf32> -> vector<8x256xf32>
    %29 = vector.broadcast %25 : vector<1x256xf32> to vector<8x256xf32>
    %30 = arith.addf %29, %28 : vector<8x256xf32>
    %c2_31 = arith.constant 2 : index
    %c0_32 = arith.constant 0 : index
    %c0_33 = arith.constant 0 : index
    %31 = vector.load %arg6[%c2_31, %c0_32, %c0_33] : memref<3x459x256xbf16, #tpu.memory_space<vmem>>, vector<1x459x256xbf16>
    %32 = vector.shape_cast %31 : vector<1x459x256xbf16> to vector<459x256xbf16>
    %cst_34 = arith.constant dense<0.000000e+00> : vector<8x256xf32>
    %33 = tpu.matmul %1, %32, %cst_34 {dimension_numbers = #tpu.dot_dimension_numbers<[1], [0], [0], [1], [0, 0, 1, 1], [], []>} : vector<8x459xbf16>, vector<459x256xbf16>, vector<8x256xf32> -> vector<8x256xf32>
    %34 = arith.addf %30, %33 : vector<8x256xf32>
    %35 = vector.extract_strided_slice %4 {offsets = [0, 0], sizes = [8, 256], strides = [1, 1]} : vector<96x256xf32> to vector<8x256xf32>
    %36 = vector.extract_strided_slice %4 {offsets = [8, 0], sizes = [8, 256], strides = [1, 1]} : vector<96x256xf32> to vector<8x256xf32>
    %37 = vector.extract_strided_slice %4 {offsets = [16, 0], sizes = [8, 256], strides = [1, 1]} : vector<96x256xf32> to vector<8x256xf32>
    %38 = vector.extract_strided_slice %4 {offsets = [24, 0], sizes = [8, 256], strides = [1, 1]} : vector<96x256xf32> to vector<8x256xf32>
    %39 = arith.mulf %35, %14 : vector<8x256xf32>
    %40 = arith.mulf %36, %24 : vector<8x256xf32>
    %41 = arith.addf %39, %40 : vector<8x256xf32>
    %42 = arith.mulf %37, %34 : vector<8x256xf32>
    %43 = arith.addf %41, %42 : vector<8x256xf32>
    %44 = arith.addf %43, %38 : vector<8x256xf32>
    %c0_35 = arith.constant 0 : index
    %c0_36 = arith.constant 0 : index
    %c0_37 = arith.constant 0 : index
    %45 = vector.load %arg8[%c0_35, %c0_36, %c0_37] : memref<3x8x256xf32, #tpu.memory_space<vmem>>, vector<1x8x256xf32>
    %46 = vector.shape_cast %45 : vector<1x8x256xf32> to vector<8x256xf32>
    %47 = vector.shape_cast %44 : vector<8x256xf32> to vector<1x8x256xf32>
    tpu.vector_store %arg8[%c0_35, %c0_36, %c0_37], %47 {strides = array<i32>} : memref<3x8x256xf32, #tpu.memory_space<vmem>>, vector<1x8x256xf32>,
    %48 = vector.extract_strided_slice %4 {offsets = [32, 0], sizes = [8, 256], strides = [1, 1]} : vector<96x256xf32> to vector<8x256xf32>
    %49 = vector.extract_strided_slice %4 {offsets = [40, 0], sizes = [8, 256], strides = [1, 1]} : vector<96x256xf32> to vector<8x256xf32>
    %50 = vector.extract_strided_slice %4 {offsets = [48, 0], sizes = [8, 256], strides = [1, 1]} : vector<96x256xf32> to vector<8x256xf32>
    %51 = vector.extract_strided_slice %4 {offsets = [56, 0], sizes = [8, 256], strides = [1, 1]} : vector<96x256xf32> to vector<8x256xf32>
    %52 = arith.mulf %48, %14 : vector<8x256xf32>
    %53 = arith.mulf %49, %24 : vector<8x256xf32>
    %54 = arith.addf %52, %53 : vector<8x256xf32>
    %55 = arith.mulf %50, %34 : vector<8x256xf32>
    %56 = arith.addf %54, %55 : vector<8x256xf32>
    %57 = arith.addf %56, %51 : vector<8x256xf32>
    %c1_38 = arith.constant 1 : index
    %c0_39 = arith.constant 0 : index
    %c0_40 = arith.constant 0 : index
    %58 = vector.load %arg8[%c1_38, %c0_39, %c0_40] : memref<3x8x256xf32, #tpu.memory_space<vmem>>, vector<1x8x256xf32>
    %59 = vector.shape_cast %58 : vector<1x8x256xf32> to vector<8x256xf32>
    %60 = vector.shape_cast %57 : vector<8x256xf32> to vector<1x8x256xf32>
    tpu.vector_store %arg8[%c1_38, %c0_39, %c0_40], %60 {strides = array<i32>} : memref<3x8x256xf32, #tpu.memory_space<vmem>>, vector<1x8x256xf32>,
    %61 = vector.extract_strided_slice %4 {offsets = [64, 0], sizes = [8, 256], strides = [1, 1]} : vector<96x256xf32> to vector<8x256xf32>
    %62 = vector.extract_strided_slice %4 {offsets = [72, 0], sizes = [8, 256], strides = [1, 1]} : vector<96x256xf32> to vector<8x256xf32>
    %63 = vector.extract_strided_slice %4 {offsets = [80, 0], sizes = [8, 256], strides = [1, 1]} : vector<96x256xf32> to vector<8x256xf32>
    %64 = vector.extract_strided_slice %4 {offsets = [88, 0], sizes = [8, 256], strides = [1, 1]} : vector<96x256xf32> to vector<8x256xf32>
    %65 = arith.mulf %61, %14 : vector<8x256xf32>
    %66 = arith.mulf %62, %24 : vector<8x256xf32>
    %67 = arith.addf %65, %66 : vector<8x256xf32>
    %68 = arith.mulf %63, %34 : vector<8x256xf32>
    %69 = arith.addf %67, %68 : vector<8x256xf32>
    %70 = arith.addf %69, %64 : vector<8x256xf32>
    %c2_41 = arith.constant 2 : index
    %c0_42 = arith.constant 0 : index
    %c0_43 = arith.constant 0 : index
    %71 = vector.load %arg8[%c2_41, %c0_42, %c0_43] : memref<3x8x256xf32, #tpu.memory_space<vmem>>, vector<1x8x256xf32>
    %72 = vector.shape_cast %71 : vector<1x8x256xf32> to vector<8x256xf32>
    %73 = vector.shape_cast %70 : vector<8x256xf32> to vector<1x8x256xf32>
    tpu.vector_store %arg8[%c2_41, %c0_42, %c0_43], %73 {strides = array<i32>} : memref<3x8x256xf32, #tpu.memory_space<vmem>>, vector<1x8x256xf32>,
    return
  }
  func.func @transform_0(%arg0: i32) -> (i32, i32) {
    %c0_i32 = arith.constant 0 : i32
    %c0_i32_0 = arith.constant 0 : i32
    %c0_i32_1 = arith.constant 0 : i32
    return %c0_i32, %c0_i32_0 : i32, i32
  }
  func.func @transform_1(%arg0: i32) -> (i32, i32) {
    %c0_i32 = arith.constant 0 : i32
    %c0_i32_0 = arith.constant 0 : i32
    %c0_i32_1 = arith.constant 0 : i32
    return %c0_i32, %c0_i32_0 : i32, i32
  }
  func.func @transform_2(%arg0: i32) -> (i32, i32) {
    %c0_i32 = arith.constant 0 : i32
    %c0_i32_0 = arith.constant 0 : i32
    %c0_i32_1 = arith.constant 0 : i32
    return %c0_i32, %c0_i32_0 : i32, i32
  }
  func.func @transform_3(%arg0: i32) -> (i32, i32) {
    %c0_i32 = arith.constant 0 : i32
    %c0_i32_0 = arith.constant 0 : i32
    return %c0_i32, %arg0 : i32, i32
  }
  func.func @transform_4(%arg0: i32) -> (i32, i32, i32) {
    %c0_i32 = arith.constant 0 : i32
    %c0_i32_0 = arith.constant 0 : i32
    %c0_i32_1 = arith.constant 0 : i32
    return %c0_i32, %c0_i32_0, %arg0 : i32, i32, i32
  }
  func.func @transform_5(%arg0: i32) -> (i32, i32, i32) {
    %c0_i32 = arith.constant 0 : i32
    %c0_i32_0 = arith.constant 0 : i32
    %c0_i32_1 = arith.constant 0 : i32
    return %c0_i32, %c0_i32_0, %arg0 : i32, i32, i32
  }
  func.func @transform_6(%arg0: i32) -> (i32, i32) {
    %c0_i32 = arith.constant 0 : i32
    %c0_i32_0 = arith.constant 0 : i32
    return %c0_i32, %arg0 : i32, i32
  }
  func.func @transform_7(%arg0: i32) -> (i32, i32, i32) {
    %c0_i32 = arith.constant 0 : i32
    %c0_i32_0 = arith.constant 0 : i32
    %c0_i32_1 = arith.constant 0 : i32
    return %c0_i32, %c0_i32_0, %arg0 : i32, i32, i32
  }
}

</mosaic_0001>

<llo_original>
// kernel: tpu_custom_call.1
$region0: #{tpu_custom_call.1}
  #allocation0 [shape = 'u32[]', space=smem, size = 0x4, offset = 0x4, fixed_abs, tag = 'smem constant byte address 0x4 - core index']
  #allocation1 [shape = 'u32[144,128]{1,0:T(1,128)}', space=vmem, size = 0x12000, scoped, tag = 'internal scratch']
  %s0 = inlined_call_operand.vmem [shape: f32[8,10], index: 0, kind: input, shape index: {}]
  %s1 = inlined_call_operand.vmem [shape: bf16[8,459], index: 1, kind: input, shape index: {}]
  %s2 = inlined_call_operand.vmem [shape: f32[96,52], index: 2, kind: input, shape index: {}]
  %s3 = inlined_call_operand.vmem [shape: f32[3,256], index: 3, kind: input, shape index: {}]
  %s4 = inlined_call_operand.vmem [shape: f32[3,10,256], index: 4, kind: input, shape index: {}]
  %s5 = inlined_call_operand.hbm [shape: bf16[3,459,256], index: 5, kind: input, shape index: {}]
  %s6 = inlined_call_operand.vmem [shape: f32[52,256], index: 6, kind: input, shape index: {}]
  %s7 = inlined_call_operand.hbm [shape: f32[3,8,256], index: 7, kind: output, shape index: {}]
  %s8 = sld [smem:[#allocation0]]
  $region42: #{tpu_custom_call.1} parent=0
    _
  %s10 = ssub.s32 1, %s8
  %s11 = scalar_select 0, %s10, %s8
  $region1: #{tpu_custom_call.1} parent=0
    #allocation2 [shape = 'u8[712704]{0}', space=vmem, size = 0xae000, scoped, tag = 'input window, operand 5, single buffered']
    #allocation3 [shape = 's32[1]{0}', space=sflag, size = 0x4, scoped, tag = 'scoped memory for tpu_custom_call.1']
    #allocation4 [shape = 's32[1]{0}', space=sflag, size = 0x4, scoped, tag = 'scoped memory for tpu_custom_call.1']
    #allocation5 [shape = 'u8[24576]{0}', space=vmem, size = 0x6000, scoped, tag = 'output window, operand 0, single buffered']
    %12 = vsyncpa [#allocation3], 0
    %13 = vsyncpa [#allocation4], 0
    // Predicated region
    $region2: #{tpu_custom_call.1} parent=1 // pred_check
      _
    $region3: #{tpu_custom_call.1} parent=1 // pred_check_branch
      %15 = sbr.rel (0) target = $region5
    $region4: #{tpu_custom_call.1} parent=1 // pred_region
      _
    $region5: #{tpu_custom_call.1} parent=1 // pred_fallthru
      _
    // Predicated region
    $region6: #{tpu_custom_call.1} parent=1 // pred_check
      _
    $region7: #{tpu_custom_call.1} parent=1 // pred_check_branch
      %17 = sbr.rel (0) target = $region9
    $region8: #{tpu_custom_call.1} parent=1 // pred_region
      _
    $region9: #{tpu_custom_call.1} parent=1 // pred_fallthru
      _
    // Predicated region
    $region10: #{tpu_custom_call.1} parent=1 // pred_check
      _
    $region11: #{tpu_custom_call.1} parent=1 // pred_check_branch
      %19 = sbr.rel (0) target = $region13
    $region12: #{tpu_custom_call.1} parent=1 // pred_region
      _
    $region13: #{tpu_custom_call.1} parent=1 // pred_fallthru
      _
    // Predicated region
    $region14: #{tpu_custom_call.1} parent=1 // pred_check
      _
    $region15: #{tpu_custom_call.1} parent=1 // pred_check_branch
      %21 = sbr.rel (0) target = $region17
    $region16: #{tpu_custom_call.1} parent=1 // pred_region
      _
    $region17: #{tpu_custom_call.1} parent=1 // pred_fallthru
      _
    // Predicated region
    $region18: #{tpu_custom_call.1} parent=1 // pred_check
      _
    $region19: #{tpu_custom_call.1} parent=1 // pred_check_branch
      %23 = sbr.rel (0) target = $region21
    $region20: #{tpu_custom_call.1} parent=1 // pred_region
      _
    $region21: #{tpu_custom_call.1} parent=1 // pred_fallthru
      _
    // Predicated region
    $region22: #{tpu_custom_call.1} parent=1 // pred_check
      _
    $region23: #{tpu_custom_call.1} parent=1 // pred_check_branch
      %25 = sbr.rel (0) target = $region25
    $region24: #{tpu_custom_call.1} parent=1 // pred_region
      %s27 = ssub.s32 22272, 22272
      %28 = vsyncadd [#allocation3], %s27
      %s29 = sshll.u32 [#allocation2], 4
      %s30 = int_to_ptr.vmem [resolvable:$true] %s29
      %35 = dma.hbm_to_vmem [thread:$0]  %s5, 22272, %s30, [#allocation3], 128, 128, 8
    $region25: #{tpu_custom_call.1} parent=1 // pred_fallthru
      _
    // Predicated region
    $region26: #{tpu_custom_call.1} parent=1 // pred_check
      _
    $region27: #{tpu_custom_call.1} parent=1 // pred_check_branch
      %37 = sbr.rel (0) target = $region29
    $region28: #{tpu_custom_call.1} parent=1 // pred_region
      _
    $region29: #{tpu_custom_call.1} parent=1 // pred_fallthru
      _
    // Predicated region
    $region30: #{tpu_custom_call.1} parent=1 // pred_check
      _
    $region31: #{tpu_custom_call.1} parent=1 // pred_check_branch
      %39 = sbr.rel (0) target = $region33
    $region32: #{tpu_custom_call.1} parent=1 // pred_region
      %40 = dma.done [#allocation3], 22272
    $region33: #{tpu_custom_call.1} parent=1 // pred_fallthru
      _
    %v42 = vld [vmem:[%s0] sm:$0xff]
    %v43 = vld [vmem:[%s1] sm:$0xff]
    %v44 = vld [vmem:[%s1 + $0x8] sm:$0xff]
    %v45 = vld [vmem:[%s2] sm:$0xff]
    %v46 = vld [vmem:[%s2 + $0x8] sm:$0xff]
    %v47 = vld [vmem:[%s2 + $0x10] sm:$0xff]
    %v48 = vld [vmem:[%s2 + $0x18] sm:$0xff]
    %v49 = vld [vmem:[%s2 + $0x20] sm:$0xff]
    %v50 = vld [vmem:[%s2 + $0x28] sm:$0xff]
    %v51 = vld [vmem:[%s2 + $0x30] sm:$0xff]
    %v52 = vld [vmem:[%s2 + $0x38] sm:$0xff]
    %v53 = vld [vmem:[%s2 + $0x40] sm:$0xff]
    %v54 = vld [vmem:[%s2 + $0x48] sm:$0xff]
    %v55 = vld [vmem:[%s2 + $0x50] sm:$0xff]
    %v56 = vld [vmem:[%s2 + $0x58] sm:$0xff]
    %v57 = vld [vmem:[%s6] sm:$0xff]
    %v58 = vld [vmem:[%s6 + $0x8] sm:$0xff]
    %v59 = vld [vmem:[%s6 + $0x10] sm:$0xff]
    %v60 = vld [vmem:[%s6 + $0x18] sm:$0xff]
    %v61 = vld [vmem:[%s6 + $0x20] sm:$0xff]
    %v62 = vld [vmem:[%s6 + $0x28] sm:$0xff]
    %v63 = vld [vmem:[%s6 + $0x30] sm:$0xff]
    %v64 = vld [vmem:[%s6 + $0x38] sm:$0xff]
    %v65 = vld [vmem:[%s6 + $0x40] sm:$0xff]
    %v66 = vld [vmem:[%s6 + $0x48] sm:$0xff]
    %v67 = vld [vmem:[%s6 + $0x50] sm:$0xff]
    %v68 = vld [vmem:[%s6 + $0x58] sm:$0xff]
    %v69 = vld [vmem:[%s6 + $0x60] sm:$0xf]
    %v70 = vld [vmem:[%s6 + $0x68] sm:$0xf]
    %vm71 = vcmask 424960
    %v73 = vsel %vm71, %v45, 0
    %v76 = vsel %vm71, %v46, 0
    %v79 = vsel %vm71, %v47, 0
    %v82 = vsel %vm71, %v48, 0
    %v85 = vsel %vm71, %v49, 0
    %v88 = vsel %vm71, %v50, 0
    %v91 = vsel %vm71, %v51, 0
    %v94 = vsel %vm71, %v52, 0
    %v97 = vsel %vm71, %v53, 0
    %v100 = vsel %vm71, %v54, 0
    %v103 = vsel %vm71, %v55, 0
    %v106 = vsel %vm71, %v56, 0
    %vm108 = vcmask 1043456
    %v110 = vsel %vm108, %v69, 0
    %v113 = vsel %vm108, %v70, 0
    %115 = vmatprep.subr.mxu0 %v58
    %116 = vmatpush1.msra.mxu0 %v57
    %117 = vmatprep.subr.mxu0 %v60
    %118 = vmatpush1.msra.mxu0 %v59
    %119 = vmatprep.subr.mxu0 %v62
    %120 = vmatpush1.msra.mxu0 %v61
    %121 = vmatprep.subr.mxu0 %v64
    %122 = vmatpush1.msra.mxu0 %v63
    %123 = vmatprep.subr.mxu0 %v66
    %124 = vmatpush1.msra.mxu0 %v65
    %125 = vmatprep.subr.mxu0 %v68
    %126 = vmatpush1.msra.mxu0 %v67
    %127 = vmatprep.subr.mxu0 %v113
    %128 = vmatpush1.msra.mxu0 %v110
    %129 = vmatprep.subr.mxu0 0.0
    %130 = vmatpush1.msra.mxu0 0.0
    %131 = vmatprep.subr.mxu0 0.0
    %132 = vmatpush1.msra.mxu0 0.0
    %133 = vmatprep.subr.mxu0 0.0
    %134 = vmatpush1.msra.mxu0 0.0
    %135 = vmatprep.subr.mxu0 0.0
    %136 = vmatpush1.msra.mxu0 0.0
    %137 = vmatprep.subr.mxu0 0.0
    %138 = vmatpush1.msra.mxu0 0.0
    %139 = vmatprep.subr.mxu0 0.0
    %140 = vmatpush1.msra.mxu0 0.0
    %141 = vmatprep.subr.mxu0 0.0
    %142 = vmatpush1.msra.mxu0 0.0
    %143 = vmatprep.subr.mxu0 0.0
    %144 = vmatpush1.msra.mxu0 0.0
    %145 = vmatprep.subr.mxu0 0.0
    %146 = vmatpush1.msra.mxu0 0.0
    %147 = vmatprep.subr.mxu0 0.0
    %148 = vmatpush1.msra.mxu0 0.0
    %149 = vmatprep.subr.mxu0 0.0
    %150 = vmatpush1.msra.mxu0 0.0
    %151 = vmatprep.subr.mxu0 0.0
    %152 = vmatpush1.msra.mxu0 0.0
    %153 = vmatprep.subr.mxu0 0.0
    %154 = vmatpush1.msra.mxu0 0.0
    %155 = vmatprep.subr.mxu0 0.0
    %156 = vmatpush1.msra.mxu0 0.0
    %157 = vmatprep.subr.mxu0 0.0
    %158 = vmatpush1.msra.mxu0 0.0
    %159 = vmatprep.subr.mxu0 0.0
    %160 = vmatpush1.msra.mxu0 0.0
    %161 = vmatprep.subr.mxu0 0.0
    %162 = vmatpush1.msra.mxu0 0.0
    %163 = vmatprep.subr.mxu0 0.0
    %164 = vmatpush1.msra.mxu0 0.0
    %165 = vmatprep.subr.mxu0 0.0
    %166 = vmatpush1.msra.mxu0 0.0
    %167 = vmatprep.subr.mxu0 0.0
    %168 = vmatpush1.msra.mxu0 0.0
    %169 = vmatprep.subr.mxu0 0.0
    %170 = vmatpush1.msra.mxu0 0.0
    %171 = vmatprep.subr.mxu0 0.0
    %172 = vmatpush1.msra.mxu0 0.0
    %173 = vmatprep.subr.mxu0 0.0
    %174 = vmatpush1.msra.mxu0 0.0
    %175 = vmatprep.subr.mxu0 0.0
    %176 = vmatpush1.msra.mxu0 0.0
    %177 = vmatprep.subr.mxu0 0.0
    %178 = vmatpush1.msra.mxu0 0.0
    %179 = vmatprep.mubr.f32.mxu0 0.0
    %180 = vmatmul.mubr.f32.gmra.mrb[0].mxu0 %v73
    %v181 = vpop.f32.mrb[0].mxu0
    %v182 = vadd.f32 0.0, %v181
    %v183 = vpop.f32.mrb[0].mxu0
    %v184 = vadd.f32 0.0, %v183
    %185 = vmatprep.mubr.f32.mxu0 0.0
    %186 = vmatmul.mubr.f32.gmra.mrb[0].mxu0 %v76
    %v187 = vpop.f32.mrb[0].mxu0
    %v188 = vadd.f32 0.0, %v187
    %v189 = vpop.f32.mrb[0].mxu0
    %v190 = vadd.f32 0.0, %v189
    %191 = vmatprep.mubr.f32.mxu0 0.0
    %192 = vmatmul.mubr.f32.gmra.mrb[0].mxu0 %v79
    %v193 = vpop.f32.mrb[0].mxu0
    %v194 = vadd.f32 0.0, %v193
    %v195 = vpop.f32.mrb[0].mxu0
    %v196 = vadd.f32 0.0, %v195
    %197 = vmatprep.mubr.f32.mxu0 0.0
    %198 = vmatmul.mubr.f32.gmra.mrb[0].mxu0 %v82
    %v199 = vpop.f32.mrb[0].mxu0
    %v200 = vadd.f32 0.0, %v199
    %v201 = vpop.f32.mrb[0].mxu0
    %v202 = vadd.f32 0.0, %v201
    %203 = vmatprep.mubr.f32.mxu0 0.0
    %204 = vmatmul.mubr.f32.gmra.mrb[0].mxu0 %v85
    %v205 = vpop.f32.mrb[0].mxu0
    %v206 = vadd.f32 0.0, %v205
    %v207 = vpop.f32.mrb[0].mxu0
    %v208 = vadd.f32 0.0, %v207
    %209 = vmatprep.mubr.f32.mxu0 0.0
    %210 = vmatmul.mubr.f32.gmra.mrb[0].mxu0 %v88
    %v211 = vpop.f32.mrb[0].mxu0
    %v212 = vadd.f32 0.0, %v211
    %v213 = vpop.f32.mrb[0].mxu0
    %v214 = vadd.f32 0.0, %v213
    %215 = vmatprep.mubr.f32.mxu0 0.0
    %216 = vmatmul.mubr.f32.gmra.mrb[0].mxu0 %v91
    %v217 = vpop.f32.mrb[0].mxu0
    %v218 = vadd.f32 0.0, %v217
    %v219 = vpop.f32.mrb[0].mxu0
    %v220 = vadd.f32 0.0, %v219
    %221 = vmatprep.mubr.f32.mxu0 0.0
    %222 = vmatmul.mubr.f32.gmra.mrb[0].mxu0 %v94
    %v223 = vpop.f32.mrb[0].mxu0
    %v224 = vadd.f32 0.0, %v223
    %v225 = vpop.f32.mrb[0].mxu0
    %v226 = vadd.f32 0.0, %v225
    %227 = vmatprep.mubr.f32.mxu0 0.0
    %228 = vmatmul.mubr.f32.gmra.mrb[0].mxu0 %v97
    %v229 = vpop.f32.mrb[0].mxu0
    %v230 = vadd.f32 0.0, %v229
    %v231 = vpop.f32.mrb[0].mxu0
    %v232 = vadd.f32 0.0, %v231
    %233 = vmatprep.mubr.f32.mxu0 0.0
    %234 = vmatmul.mubr.f32.gmra.mrb[0].mxu0 %v100
    %v235 = vpop.f32.mrb[0].mxu0
    %v236 = vadd.f32 0.0, %v235
    %v237 = vpop.f32.mrb[0].mxu0
    %v238 = vadd.f32 0.0, %v237
    %239 = vmatprep.mubr.f32.mxu0 0.0
    %240 = vmatmul.mubr.f32.gmra.mrb[0].mxu0 %v103
    %v241 = vpop.f32.mrb[0].mxu0
    %v242 = vadd.f32 0.0, %v241
    %v243 = vpop.f32.mrb[0].mxu0
    %v244 = vadd.f32 0.0, %v243
    %245 = vmatprep.mubr.f32.mxu0 0.0
    %246 = vmatmul.mubr.f32.gmra.mrb[0].mxu0 %v106
    %v247 = vpop.f32.mrb[0].mxu0
    %v248 = vadd.f32 0.0, %v247
    %v249 = vpop.f32.mrb[0].mxu0
    %v250 = vadd.f32 0.0, %v249
    %251 = vdwg.mxu0
    %v252 = vld [vmem:[%s3] ss:$4 sm:$0x3]
    %v253 = vld [vmem:[%s4] sm:$0xff]
    %v254 = vld [vmem:[%s4 + $0x8] sm:$0xff]
    %v255 = vld [vmem:[%s4 + $0x10] sm:$0x3]
    %v256 = vld [vmem:[%s4 + $0x18] sm:$0x3]
    %vm257 = vcmask 80896
    %v259 = vsel %vm257, %v42, 0
    %vm261 = vcmask 1041408
    %v263 = vsel %vm261, %v255, 0
    %v266 = vsel %vm261, %v256, 0
    %268 = vmatprep.subr.mxu0 %v254
    %269 = vmatpush1.msra.mxu0 %v253
    %270 = vmatprep.subr.mxu0 %v266
    %271 = vmatpush1.msra.mxu0 %v263
    %272 = vmatprep.subr.mxu0 0.0
    %273 = vmatpush1.msra.mxu0 0.0
    %274 = vmatprep.subr.mxu0 0.0
    %275 = vmatpush1.msra.mxu0 0.0
    %276 = vmatprep.subr.mxu0 0.0
    %277 = vmatpush1.msra.mxu0 0.0
    %278 = vmatprep.subr.mxu0 0.0
    %279 = vmatpush1.msra.mxu0 0.0
    %280 = vmatprep.subr.mxu0 0.0
    %281 = vmatpush1.msra.mxu0 0.0
    %282 = vmatprep.subr.mxu0 0.0
    %283 = vmatpush1.msra.mxu0 0.0
    %284 = vmatprep.subr.mxu0 0.0
    %285 = vmatpush1.msra.mxu0 0.0
    %286 = vmatprep.subr.mxu0 0.0
    %287 = vmatpush1.msra.mxu0 0.0
    %288 = vmatprep.subr.mxu0 0.0
    %289 = vmatpush1.msra.mxu0 0.0
    %290 = vmatprep.subr.mxu0 0.0
    %291 = vmatpush1.msra.mxu0 0.0
    %292 = vmatprep.subr.mxu0 0.0
    %293 = vmatpush1.msra.mxu0 0.0
    %294 = vmatprep.subr.mxu0 0.0
    %295 = vmatpush1.msra.mxu0 0.0
    %296 = vmatprep.subr.mxu0 0.0
    %297 = vmatpush1.msra.mxu0 0.0
    %298 = vmatprep.subr.mxu0 0.0
    %299 = vmatpush1.msra.mxu0 0.0
    %300 = vmatprep.subr.mxu0 0.0
    %301 = vmatpush1.msra.mxu0 0.0
    %302 = vmatprep.subr.mxu0 0.0
    %303 = vmatpush1.msra.mxu0 0.0
    %304 = vmatprep.subr.mxu0 0.0
    %305 = vmatpush1.msra.mxu0 0.0
    %306 = vmatprep.subr.mxu0 0.0
    %307 = vmatpush1.msra.mxu0 0.0
    %308 = vmatprep.subr.mxu0 0.0
    %309 = vmatpush1.msra.mxu0 0.0
    %310 = vmatprep.subr.mxu0 0.0
    %311 = vmatpush1.msra.mxu0 0.0
    %312 = vmatprep.subr.mxu0 0.0
    %313 = vmatpush1.msra.mxu0 0.0
    %314 = vmatprep.subr.mxu0 0.0
    %315 = vmatpush1.msra.mxu0 0.0
    %316 = vmatprep.subr.mxu0 0.0
    %317 = vmatpush1.msra.mxu0 0.0
    %318 = vmatprep.subr.mxu0 0.0
    %319 = vmatpush1.msra.mxu0 0.0
    %320 = vmatprep.subr.mxu0 0.0
    %321 = vmatpush1.msra.mxu0 0.0
    %322 = vmatprep.subr.mxu0 0.0
    %323 = vmatpush1.msra.mxu0 0.0
    %324 = vmatprep.subr.mxu0 0.0
    %325 = vmatpush1.msra.mxu0 0.0
    %326 = vmatprep.subr.mxu0 0.0
    %327 = vmatpush1.msra.mxu0 0.0
    %328 = vmatprep.subr.mxu0 0.0
    %329 = vmatpush1.msra.mxu0 0.0
    %330 = vmatprep.subr.mxu0 0.0
    %331 = vmatpush1.msra.mxu0 0.0
    %332 = vmatprep.mubr.f32.mxu0 0.0
    %333 = vmatmul.mubr.f32.gmra.mrb[0].mxu0 %v259
    %v334 = vpop.f32.mrb[0].mxu0
    %v335 = vadd.f32 0.0, %v334
    %v336 = vpop.f32.mrb[0].mxu0
    %v337 = vadd.f32 0.0, %v336
    %338 = vdwg.mxu0
    %v340 = vlaneseq
    %v341 = vshrl.u32 %v340, 7
    %v342 = vsub.s32 0, %v341
    %v343 = vrot.slane %v252, %v342
    %v344 = vlaneseq
    %v345 = vshrl.u32 %v344, 7
    %v346 = vsub.s32 1, %v345
    %v347 = vrot.slane %v252, %v346
    %v350 = vadd.f32 %v343, %v335
    %v351 = vadd.f32 %v347, %v337
    %v352 = vld [vmem:[#allocation2] sm:$0xff]
    %v353 = vld [vmem:[#allocation2 + $0x8] sm:$0xff]
    %v354 = vld [vmem:[#allocation2 + $0x10] sm:$0xff]
    %v355 = vld [vmem:[#allocation2 + $0x18] sm:$0xff]
    %v356 = vld [vmem:[#allocation2 + $0x20] sm:$0xff]
    %v357 = vld [vmem:[#allocation2 + $0x28] sm:$0xff]
    %v358 = vld [vmem:[#allocation2 + $0x30] sm:$0xff]
    %v359 = vld [vmem:[#allocation2 + $0x38] sm:$0xff]
    %v360 = vld [vmem:[#allocation2 + $0x40] sm:$0xff]
    %v361 = vld [vmem:[#allocation2 + $0x48] sm:$0xff]
    %v362 = vld [vmem:[#allocation2 + $0x50] sm:$0xff]
    %v363 = vld [vmem:[#allocation2 + $0x58] sm:$0xff]
    %v364 = vld [vmem:[#allocation2 + $0x60] sm:$0xff]
    %v365 = vld [vmem:[#allocation2 + $0x68] sm:$0xff]
    %v366 = vld [vmem:[#allocation2 + $0x70] sm:$0xff]
    %v367 = vld [vmem:[#allocation2 + $0x78] sm:$0xff]
    %v368 = vld [vmem:[#allocation2 + $0x80] sm:$0xff]
    %v369 = vld [vmem:[#allocation2 + $0x88] sm:$0xff]
    %v370 = vld [vmem:[#allocation2 + $0x90] sm:$0xff]
    %v371 = vld [vmem:[#allocation2 + $0x98] sm:$0xff]
    %v372 = vld [vmem:[#allocation2 + $0xa0] sm:$0xff]
    %v373 = vld [vmem:[#allocation2 + $0xa8] sm:$0xff]
    %v374 = vld [vmem:[#allocation2 + $0xb0] sm:$0xff]
    %v375 = vld [vmem:[#allocation2 + $0xb8] sm:$0xff]
    %v376 = vld [vmem:[#allocation2 + $0xc0] sm:$0xff]
    %v377 = vld [vmem:[#allocation2 + $0xc8] sm:$0xff]
    %v378 = vld [vmem:[#allocation2 + $0xd0] sm:$0xff]
    %v379 = vld [vmem:[#allocation2 + $0xd8] sm:$0xff]
    %v380 = vld [vmem:[#allocation2 + $0xe0] sm:$0xff]
    %v381 = vld [vmem:[#allocation2 + $0xe8] sm:$0xff]
    %v382 = vld [vmem:[#allocation2 + $0xf0] sm:$0xff]
    %v383 = vld [vmem:[#allocation2 + $0xf8] sm:$0xff]
    %v384 = vld [vmem:[#allocation2 + $0x100] sm:$0xff]
    %v385 = vld [vmem:[#allocation2 + $0x108] sm:$0xff]
    %v386 = vld [vmem:[#allocation2 + $0x110] sm:$0xff]
    %v387 = vld [vmem:[#allocation2 + $0x118] sm:$0xff]
    %v388 = vld [vmem:[#allocation2 + $0x120] sm:$0xff]
    %v389 = vld [vmem:[#allocation2 + $0x128] sm:$0xff]
    %v390 = vld [vmem:[#allocation2 + $0x130] sm:$0xff]
    %v391 = vld [vmem:[#allocation2 + $0x138] sm:$0xff]
    %v392 = vld [vmem:[#allocation2 + $0x140] sm:$0xff]
    %v393 = vld [vmem:[#allocation2 + $0x148] sm:$0xff]
    %v394 = vld [vmem:[#allocation2 + $0x150] sm:$0xff]
    %v395 = vld [vmem:[#allocation2 + $0x158] sm:$0xff]
    %v396 = vld [vmem:[#allocation2 + $0x160] sm:$0xff]
    %v397 = vld [vmem:[#allocation2 + $0x168] sm:$0xff]
    %v398 = vld [vmem:[#allocation2 + $0x170] sm:$0xff]
    %v399 = vld [vmem:[#allocation2 + $0x178] sm:$0xff]
    %v400 = vld [vmem:[#allocation2 + $0x180] sm:$0xff]
    %v401 = vld [vmem:[#allocation2 + $0x188] sm:$0xff]
    %v402 = vld [vmem:[#allocation2 + $0x190] sm:$0xff]
    %v403 = vld [vmem:[#allocation2 + $0x198] sm:$0xff]
    %v404 = vld [vmem:[#allocation2 + $0x1a0] sm:$0xff]
    %v405 = vld [vmem:[#allocation2 + $0x1a8] sm:$0xff]
    %v406 = vld [vmem:[#allocation2 + $0x1b0] sm:$0xff]
    %v407 = vld [vmem:[#allocation2 + $0x1b8] sm:$0xff]
    %v408 = vld [vmem:[#allocation2 + $0x1c0] sm:$0xff]
    %v409 = vld [vmem:[#allocation2 + $0x1c8] sm:$0x33]
    %v412 = vunpack.c.l.b16 %v43
    %v413 = vunpack.c.h.b16 %v43
    %v414 = vunpack.c.l.b16 %v44
    %v415 = vunpack.c.h.b16 %v44
    %v416 = vpack.c.b16 %v412, %v412
    %v417 = vpack.c.b16 %v413, %v413
    %v418 = vpack.c.b16 %v414, %v414
    %v419 = vpack.c.b16 %v415, %v415
    %v481 = vunpack.c.l.b16 %v352
    %v482 = vunpack.c.h.b16 %v352
    %v483 = vunpack.c.l.b16 %v353
    %v484 = vunpack.c.h.b16 %v353
    %v485 = vunpack.c.l.b16 %v354
    %v486 = vunpack.c.h.b16 %v354
    %v487 = vunpack.c.l.b16 %v355
    %v488 = vunpack.c.h.b16 %v355
    %v489 = vunpack.c.l.b16 %v356
    %v490 = vunpack.c.h.b16 %v356
    %v491 = vunpack.c.l.b16 %v357
    %v492 = vunpack.c.h.b16 %v357
    %v493 = vunpack.c.l.b16 %v358
    %v494 = vunpack.c.h.b16 %v358
    %v495 = vunpack.c.l.b16 %v359
    %v496 = vunpack.c.h.b16 %v359
    %v497 = vunpack.c.l.b16 %v360
    %v498 = vunpack.c.h.b16 %v360
    %v499 = vunpack.c.l.b16 %v361
    %v500 = vunpack.c.h.b16 %v361
    %v501 = vunpack.c.l.b16 %v362
    %v502 = vunpack.c.h.b16 %v362
    %v503 = vunpack.c.l.b16 %v363
    %v504 = vunpack.c.h.b16 %v363
    %v505 = vunpack.c.l.b16 %v364
    %v506 = vunpack.c.h.b16 %v364
    %v507 = vunpack.c.l.b16 %v365
    %v508 = vunpack.c.h.b16 %v365
    %v509 = vunpack.c.l.b16 %v366
    %v510 = vunpack.c.h.b16 %v366
    %v511 = vunpack.c.l.b16 %v367
    %v512 = vunpack.c.h.b16 %v367
    %v513 = vunpack.c.l.b16 %v368
    %v514 = vunpack.c.h.b16 %v368
    %v515 = vunpack.c.l.b16 %v369
    %v516 = vunpack.c.h.b16 %v369
    %v517 = vunpack.c.l.b16 %v370
    %v518 = vunpack.c.h.b16 %v370
    %v519 = vunpack.c.l.b16 %v371
    %v520 = vunpack.c.h.b16 %v371
    %v521 = vunpack.c.l.b16 %v372
    %v522 = vunpack.c.h.b16 %v372
    %v523 = vunpack.c.l.b16 %v373
    %v524 = vunpack.c.h.b16 %v373
    %v525 = vunpack.c.l.b16 %v374
    %v526 = vunpack.c.h.b16 %v374
    %v527 = vunpack.c.l.b16 %v375
    %v528 = vunpack.c.h.b16 %v375
    %v529 = vunpack.c.l.b16 %v376
    %v530 = vunpack.c.h.b16 %v376
    %v531 = vunpack.c.l.b16 %v377
    %v532 = vunpack.c.h.b16 %v377
    %v533 = vunpack.c.l.b16 %v378
    %v534 = vunpack.c.h.b16 %v378
    %v535 = vunpack.c.l.b16 %v379
    %v536 = vunpack.c.h.b16 %v379
    %v537 = vunpack.c.l.b16 %v380
    %v538 = vunpack.c.h.b16 %v380
    %v539 = vunpack.c.l.b16 %v381
    %v540 = vunpack.c.h.b16 %v381
    %v541 = vunpack.c.l.b16 %v382
    %v542 = vunpack.c.h.b16 %v382
    %v543 = vunpack.c.l.b16 %v383
    %v544 = vunpack.c.h.b16 %v383
    %v545 = vunpack.c.l.b16 %v384
    %v546 = vunpack.c.h.b16 %v384
    %v547 = vunpack.c.l.b16 %v385
    %v548 = vunpack.c.h.b16 %v385
    %v549 = vunpack.c.l.b16 %v386
    %v550 = vunpack.c.h.b16 %v386
    %v551 = vunpack.c.l.b16 %v387
    %v552 = vunpack.c.h.b16 %v387
    %v553 = vunpack.c.l.b16 %v388
    %v554 = vunpack.c.h.b16 %v388
    %v555 = vunpack.c.l.b16 %v389
    %v556 = vunpack.c.h.b16 %v389
    %v557 = vunpack.c.l.b16 %v390
    %v558 = vunpack.c.h.b16 %v390
    %v559 = vunpack.c.l.b16 %v391
    %v560 = vunpack.c.h.b16 %v391
    %v561 = vunpack.c.l.b16 %v392
    %v562 = vunpack.c.h.b16 %v392
    %v563 = vunpack.c.l.b16 %v393
    %v564 = vunpack.c.h.b16 %v393
    %v565 = vunpack.c.l.b16 %v394
    %v566 = vunpack.c.h.b16 %v394
    %v567 = vunpack.c.l.b16 %v395
    %v568 = vunpack.c.h.b16 %v395
    %v569 = vunpack.c.l.b16 %v396
    %v570 = vunpack.c.h.b16 %v396
    %v571 = vunpack.c.l.b16 %v397
    %v572 = vunpack.c.h.b16 %v397
    %v573 = vunpack.c.l.b16 %v398
    %v574 = vunpack.c.h.b16 %v398
    %v575 = vunpack.c.l.b16 %v399
    %v576 = vunpack.c.h.b16 %v399
    %v577 = vunpack.c.l.b16 %v400
    %v578 = vunpack.c.h.b16 %v400
    %v579 = vunpack.c.l.b16 %v401
    %v580 = vunpack.c.h.b16 %v401
    %v581 = vunpack.c.l.b16 %v402
    %v582 = vunpack.c.h.b16 %v402
    %v583 = vunpack.c.l.b16 %v403
    %v584 = vunpack.c.h.b16 %v403
    %v585 = vunpack.c.l.b16 %v404
    %v586 = vunpack.c.h.b16 %v404
    %v587 = vunpack.c.l.b16 %v405
    %v588 = vunpack.c.h.b16 %v405
    %v589 = vunpack.c.l.b16 %v406
    %v590 = vunpack.c.h.b16 %v406
    %v591 = vunpack.c.l.b16 %v407
    %v592 = vunpack.c.h.b16 %v407
    %v593 = vunpack.c.l.b16 %v408
    %v594 = vunpack.c.h.b16 %v408
    %v595 = vunpack.c.l.b16 %v409
    %v596 = vunpack.c.h.b16 %v409
    %v597 = vpack.c.b16 %v483, %v481
    %v598 = vpack.c.b16 %v484, %v482
    %v599 = vpack.c.b16 %v487, %v485
    %v600 = vpack.c.b16 %v488, %v486
    %v601 = vpack.c.b16 %v491, %v489
    %v602 = vpack.c.b16 %v492, %v490
    %v603 = vpack.c.b16 %v495, %v493
    %v604 = vpack.c.b16 %v496, %v494
    %v605 = vpack.c.b16 %v499, %v497
    %v606 = vpack.c.b16 %v500, %v498
    %v607 = vpack.c.b16 %v503, %v501
    %v608 = vpack.c.b16 %v504, %v502
    %v609 = vpack.c.b16 %v507, %v505
    %v610 = vpack.c.b16 %v508, %v506
    %v611 = vpack.c.b16 %v511, %v509
    %v612 = vpack.c.b16 %v512, %v510
    %v613 = vpack.c.b16 %v515, %v513
    %v614 = vpack.c.b16 %v516, %v514
    %v615 = vpack.c.b16 %v519, %v517
    %v616 = vpack.c.b16 %v520, %v518
    %v617 = vpack.c.b16 %v523, %v521
    %v618 = vpack.c.b16 %v524, %v522
    %v619 = vpack.c.b16 %v527, %v525
    %v620 = vpack.c.b16 %v528, %v526
    %v621 = vpack.c.b16 %v531, %v529
    %v622 = vpack.c.b16 %v532, %v530
    %v623 = vpack.c.b16 %v535, %v533
    %v624 = vpack.c.b16 %v536, %v534
    %v625 = vpack.c.b16 %v539, %v537
    %v626 = vpack.c.b16 %v540, %v538
    %v627 = vpack.c.b16 %v543, %v541
    %v628 = vpack.c.b16 %v544, %v542
    %v629 = vpack.c.b16 %v547, %v545
    %v630 = vpack.c.b16 %v548, %v546
    %v631 = vpack.c.b16 %v551, %v549
    %v632 = vpack.c.b16 %v552, %v550
    %v633 = vpack.c.b16 %v555, %v553
    %v634 = vpack.c.b16 %v556, %v554
    %v635 = vpack.c.b16 %v559, %v557
    %v636 = vpack.c.b16 %v560, %v558
    %v637 = vpack.c.b16 %v563, %v561
    %v638 = vpack.c.b16 %v564, %v562
    %v639 = vpack.c.b16 %v567, %v565
    %v640 = vpack.c.b16 %v568, %v566
    %v641 = vpack.c.b16 %v571, %v569
    %v642 = vpack.c.b16 %v572, %v570
    %v643 = vpack.c.b16 %v575, %v573
    %v644 = vpack.c.b16 %v576, %v574
    %v645 = vpack.c.b16 %v579, %v577
    %v646 = vpack.c.b16 %v580, %v578
    %v647 = vpack.c.b16 %v583, %v581
    %v648 = vpack.c.b16 %v584, %v582
    %v649 = vpack.c.b16 %v587, %v585
    %v650 = vpack.c.b16 %v588, %v586
    %v651 = vpack.c.b16 %v591, %v589
    %v652 = vpack.c.b16 %v592, %v590
    %v653 = vpack.c.b16 %v595, %v593
    %v654 = vpack.c.b16 %v596, %v594
    %vm711 = vcmask 613376
    %v713 = vsel %vm711, %v419, 0
    %vm715 = vcmask 1044480
    %vm716 = vcmask 1045504
    %v717 = vsel %vm715, 4294967295, 65535
    %v718 = vsel %vm716, %v717, 0
    %v720 = vand.u32 %v653, %v718
    %v723 = vand.u32 %v654, %v718
    %725 = vmatprep.subr.bf16.mxu0 %v598
    %726 = vmatpush1.bf16.msra.mxu0 %v597
    %727 = vmatprep.subr.bf16.mxu0 %v600
    %728 = vmatpush1.bf16.msra.mxu0 %v599
    %729 = vmatprep.subr.bf16.mxu0 %v602
    %730 = vmatpush1.bf16.msra.mxu0 %v601
    %731 = vmatprep.subr.bf16.mxu0 %v604
    %732 = vmatpush1.bf16.msra.mxu0 %v603
    %733 = vmatprep.subr.bf16.mxu0 %v606
    %734 = vmatpush1.bf16.msra.mxu0 %v605
    %735 = vmatprep.subr.bf16.mxu0 %v608
    %736 = vmatpush1.bf16.msra.mxu0 %v607
    %737 = vmatprep.subr.bf16.mxu0 %v610
    %738 = vmatpush1.bf16.msra.mxu0 %v609
    %739 = vmatprep.subr.bf16.mxu0 %v612
    %740 = vmatpush1.bf16.msra.mxu0 %v611
    %741 = vmatprep.subr.bf16.mxu0 %v614
    %742 = vmatpush1.bf16.msra.mxu0 %v613
    %743 = vmatprep.subr.bf16.mxu0 %v616
    %744 = vmatpush1.bf16.msra.mxu0 %v615
    %745 = vmatprep.subr.bf16.mxu0 %v618
    %746 = vmatpush1.bf16.msra.mxu0 %v617
    %747 = vmatprep.subr.bf16.mxu0 %v620
    %748 = vmatpush1.bf16.msra.mxu0 %v619
    %749 = vmatprep.subr.bf16.mxu0 %v622
    %750 = vmatpush1.bf16.msra.mxu0 %v621
    %751 = vmatprep.subr.bf16.mxu0 %v624
    %752 = vmatpush1.bf16.msra.mxu0 %v623
    %753 = vmatprep.subr.bf16.mxu0 %v626
    %754 = vmatpush1.bf16.msra.mxu0 %v625
    %755 = vmatprep.subr.bf16.mxu0 %v628
    %756 = vmatpush1.bf16.msra.mxu0 %v627
    %757 = vmatprep.mubr.bf16.mxu0 %v417
    %758 = vmatmul.mubr.bf16.gmra.mrb[0].mxu0 %v416
    %v759 = vpop.f32.mrb[0].mxu0
    %v760 = vadd.f32 0.0, %v759
    %v761 = vpop.f32.mrb[0].mxu0
    %v762 = vadd.f32 0.0, %v761
    %v763 = vpop.f32.mrb[0].mxu0
    %v764 = vpop.f32.mrb[0].mxu0
    %765 = vdwg.mxu0
    %766 = vmatprep.subr.bf16.mxu0 %v630
    %767 = vmatpush1.bf16.msra.mxu0 %v629
    %768 = vmatprep.subr.bf16.mxu0 %v632
    %769 = vmatpush1.bf16.msra.mxu0 %v631
    %770 = vmatprep.subr.bf16.mxu0 %v634
    %771 = vmatpush1.bf16.msra.mxu0 %v633
    %772 = vmatprep.subr.bf16.mxu0 %v636
    %773 = vmatpush1.bf16.msra.mxu0 %v635
    %774 = vmatprep.subr.bf16.mxu0 %v638
    %775 = vmatpush1.bf16.msra.mxu0 %v637
    %776 = vmatprep.subr.bf16.mxu0 %v640
    %777 = vmatpush1.bf16.msra.mxu0 %v639
    %778 = vmatprep.subr.bf16.mxu0 %v642
    %779 = vmatpush1.bf16.msra.mxu0 %v641
    %780 = vmatprep.subr.bf16.mxu0 %v644
    %781 = vmatpush1.bf16.msra.mxu0 %v643
    %782 = vmatprep.subr.bf16.mxu0 %v646
    %783 = vmatpush1.bf16.msra.mxu0 %v645
    %784 = vmatprep.subr.bf16.mxu0 %v648
    %785 = vmatpush1.bf16.msra.mxu0 %v647
    %786 = vmatprep.subr.bf16.mxu0 %v650
    %787 = vmatpush1.bf16.msra.mxu0 %v649
    %788 = vmatprep.subr.bf16.mxu0 %v652
    %789 = vmatpush1.bf16.msra.mxu0 %v651
    %790 = vmatprep.subr.bf16.mxu0 %v723
    %791 = vmatpush1.bf16.msra.mxu0 %v720
    %792 = vmatprep.subr.bf16.mxu0 0
    %793 = vmatpush1.bf16.msra.mxu0 0
    %794 = vmatprep.subr.bf16.mxu0 0
    %795 = vmatpush1.bf16.msra.mxu0 0
    %796 = vmatprep.subr.bf16.mxu0 0
    %797 = vmatpush1.bf16.msra.mxu0 0
    %798 = vmatprep.mubr.bf16.mxu0 %v713
    %799 = vmatmul.mubr.bf16.gmra.mrb[0].mxu0 %v418
    %v800 = vpop.f32.mrb[0].mxu0
    %v801 = vadd.f32 %v760, %v800
    %v802 = vpop.f32.mrb[0].mxu0
    %v803 = vadd.f32 %v762, %v802
    %v804 = vpop.f32.mrb[0].mxu0
    %v805 = vpop.f32.mrb[0].mxu0
    %806 = vdwg.mxu0
    %v807 = vadd.f32 %v350, %v801
    %v808 = vadd.f32 %v351, %v803
    %s809 = scalar_lea.vmem %s3, 1
    %v810 = vld [vmem:[%s809] ss:$4 sm:$0x3]
    %s811 = scalar_lea.vmem %s4, 32
    %v812 = vld [vmem:[%s811] sm:$0xff]
    %v813 = vld [vmem:[%s811 + $0x8] sm:$0xff]
    %v814 = vld [vmem:[%s811 + $0x10] sm:$0x3]
    %v815 = vld [vmem:[%s811 + $0x18] sm:$0x3]
    %v817 = vsel %vm261, %v814, 0
    %v820 = vsel %vm261, %v815, 0
    %822 = vmatprep.subr.mxu0 %v813
    %823 = vmatpush1.msra.mxu0 %v812
    %824 = vmatprep.subr.mxu0 %v820
    %825 = vmatpush1.msra.mxu0 %v817
    %826 = vmatprep.subr.mxu0 0.0
    %827 = vmatpush1.msra.mxu0 0.0
    %828 = vmatprep.subr.mxu0 0.0
    %829 = vmatpush1.msra.mxu0 0.0
    %830 = vmatprep.subr.mxu0 0.0
    %831 = vmatpush1.msra.mxu0 0.0
    %832 = vmatprep.subr.mxu0 0.0
    %833 = vmatpush1.msra.mxu0 0.0
    %834 = vmatprep.subr.mxu0 0.0
    %835 = vmatpush1.msra.mxu0 0.0
    %836 = vmatprep.subr.mxu0 0.0
    %837 = vmatpush1.msra.mxu0 0.0
    %838 = vmatprep.subr.mxu0 0.0
    %839 = vmatpush1.msra.mxu0 0.0
    %840 = vmatprep.subr.mxu0 0.0
    %841 = vmatpush1.msra.mxu0 0.0
    %842 = vmatprep.subr.mxu0 0.0
    %843 = vmatpush1.msra.mxu0 0.0
    %844 = vmatprep.subr.mxu0 0.0
    %845 = vmatpush1.msra.mxu0 0.0
    %846 = vmatprep.subr.mxu0 0.0
    %847 = vmatpush1.msra.mxu0 0.0
    %848 = vmatprep.subr.mxu0 0.0
    %849 = vmatpush1.msra.mxu0 0.0
    %850 = vmatprep.subr.mxu0 0.0
    %851 = vmatpush1.msra.mxu0 0.0
    %852 = vmatprep.subr.mxu0 0.0
    %853 = vmatpush1.msra.mxu0 0.0
    %854 = vmatprep.subr.mxu0 0.0
    %855 = vmatpush1.msra.mxu0 0.0
    %856 = vmatprep.subr.mxu0 0.0
    %857 = vmatpush1.msra.mxu0 0.0
    %858 = vmatprep.subr.mxu0 0.0
    %859 = vmatpush1.msra.mxu0 0.0
    %860 = vmatprep.subr.mxu0 0.0
    %861 = vmatpush1.msra.mxu0 0.0
    %862 = vmatprep.subr.mxu0 0.0
    %863 = vmatpush1.msra.mxu0 0.0
    %864 = vmatprep.subr.mxu0 0.0
    %865 = vmatpush1.msra.mxu0 0.0
    %866 = vmatprep.subr.mxu0 0.0
    %867 = vmatpush1.msra.mxu0 0.0
    %868 = vmatprep.subr.mxu0 0.0
    %869 = vmatpush1.msra.mxu0 0.0
    %870 = vmatprep.subr.mxu0 0.0
    %871 = vmatpush1.msra.mxu0 0.0
    %872 = vmatprep.subr.mxu0 0.0
    %873 = vmatpush1.msra.mxu0 0.0
    %874 = vmatprep.subr.mxu0 0.0
    %875 = vmatpush1.msra.mxu0 0.0
    %876 = vmatprep.subr.mxu0 0.0
    %877 = vmatpush1.msra.mxu0 0.0
    %878 = vmatprep.subr.mxu0 0.0
    %879 = vmatpush1.msra.mxu0 0.0
    %880 = vmatprep.subr.mxu0 0.0
    %881 = vmatpush1.msra.mxu0 0.0
    %882 = vmatprep.subr.mxu0 0.0
    %883 = vmatpush1.msra.mxu0 0.0
    %884 = vmatprep.subr.mxu0 0.0
    %885 = vmatpush1.msra.mxu0 0.0
    %886 = vmatprep.mubr.f32.mxu0 0.0
    %887 = vmatmul.mubr.f32.gmra.mrb[0].mxu0 %v259
    %v888 = vpop.f32.mrb[0].mxu0
    %v889 = vadd.f32 0.0, %v888
    %v890 = vpop.f32.mrb[0].mxu0
    %v891 = vadd.f32 0.0, %v890
    %892 = vdwg.mxu0
    %v894 = vlaneseq
    %v895 = vshrl.u32 %v894, 7
    %v896 = vsub.s32 0, %v895
    %v897 = vrot.slane %v810, %v896
    %v898 = vlaneseq
    %v899 = vshrl.u32 %v898, 7
    %v900 = vsub.s32 1, %v899
    %v901 = vrot.slane %v810, %v900
    %v904 = vadd.f32 %v897, %v889
    %v905 = vadd.f32 %v901, %v891
    %s906 = scalar_lea.vmem [#allocation2], 464
    %v907 = vld [vmem:[%s906] sm:$0xff]
    %v908 = vld [vmem:[%s906 + $0x8] sm:$0xff]
    %v909 = vld [vmem:[%s906 + $0x10] sm:$0xff]
    %v910 = vld [vmem:[%s906 + $0x18] sm:$0xff]
    %v911 = vld [vmem:[%s906 + $0x20] sm:$0xff]
    %v912 = vld [vmem:[%s906 + $0x28] sm:$0xff]
    %v913 = vld [vmem:[%s906 + $0x30] sm:$0xff]
    %v914 = vld [vmem:[%s906 + $0x38] sm:$0xff]
    %v915 = vld [vmem:[%s906 + $0x40] sm:$0xff]
    %v916 = vld [vmem:[%s906 + $0x48] sm:$0xff]
    %v917 = vld [vmem:[%s906 + $0x50] sm:$0xff]
    %v918 = vld [vmem:[%s906 + $0x58] sm:$0xff]
    %v919 = vld [vmem:[%s906 + $0x60] sm:$0xff]
    %v920 = vld [vmem:[%s906 + $0x68] sm:$0xff]
    %v921 = vld [vmem:[%s906 + $0x70] sm:$0xff]
    %v922 = vld [vmem:[%s906 + $0x78] sm:$0xff]
    %v923 = vld [vmem:[%s906 + $0x80] sm:$0xff]
    %v924 = vld [vmem:[%s906 + $0x88] sm:$0xff]
    %v925 = vld [vmem:[%s906 + $0x90] sm:$0xff]
    %v926 = vld [vmem:[%s906 + $0x98] sm:$0xff]
    %v927 = vld [vmem:[%s906 + $0xa0] sm:$0xff]
    %v928 = vld [vmem:[%s906 + $0xa8] sm:$0xff]
    %v929 = vld [vmem:[%s906 + $0xb0] sm:$0xff]
    %v930 = vld [vmem:[%s906 + $0xb8] sm:$0xff]
    %v931 = vld [vmem:[%s906 + $0xc0] sm:$0xff]
    %v932 = vld [vmem:[%s906 + $0xc8] sm:$0xff]
    %v933 = vld [vmem:[%s906 + $0xd0] sm:$0xff]
    %v934 = vld [vmem:[%s906 + $0xd8] sm:$0xff]
    %v935 = vld [vmem:[%s906 + $0xe0] sm:$0xff]
    %v936 = vld [vmem:[%s906 + $0xe8] sm:$0xff]
    %v937 = vld [vmem:[%s906 + $0xf0] sm:$0xff]
    %v938 = vld [vmem:[%s906 + $0xf8] sm:$0xff]
    %v939 = vld [vmem:[%s906 + $0x100] sm:$0xff]
    %v940 = vld [vmem:[%s906 + $0x108] sm:$0xff]
    %v941 = vld [vmem:[%s906 + $0x110] sm:$0xff]
    %v942 = vld [vmem:[%s906 + $0x118] sm:$0xff]
    %v943 = vld [vmem:[%s906 + $0x120] sm:$0xff]
    %v944 = vld [vmem:[%s906 + $0x128] sm:$0xff]
    %v945 = vld [vmem:[%s906 + $0x130] sm:$0xff]
    %v946 = vld [vmem:[%s906 + $0x138] sm:$0xff]
    %v947 = vld [vmem:[%s906 + $0x140] sm:$0xff]
    %v948 = vld [vmem:[%s906 + $0x148] sm:$0xff]
    %v949 = vld [vmem:[%s906 + $0x150] sm:$0xff]
    %v950 = vld [vmem:[%s906 + $0x158] sm:$0xff]
    %v951 = vld [vmem:[%s906 + $0x160] sm:$0xff]
    %v952 = vld [vmem:[%s906 + $0x168] sm:$0xff]
    %v953 = vld [vmem:[%s906 + $0x170] sm:$0xff]
    %v954 = vld [vmem:[%s906 + $0x178] sm:$0xff]
    %v955 = vld [vmem:[%s906 + $0x180] sm:$0xff]
    %v956 = vld [vmem:[%s906 + $0x188] sm:$0xff]
    %v957 = vld [vmem:[%s906 + $0x190] sm:$0xff]
    %v958 = vld [vmem:[%s906 + $0x198] sm:$0xff]
    %v959 = vld [vmem:[%s906 + $0x1a0] sm:$0xff]
    %v960 = vld [vmem:[%s906 + $0x1a8] sm:$0xff]
    %v961 = vld [vmem:[%s906 + $0x1b0] sm:$0xff]
    %v962 = vld [vmem:[%s906 + $0x1b8] sm:$0xff]
    %v963 = vld [vmem:[%s906 + $0x1c0] sm:$0xff]
    %v964 = vld [vmem:[%s906 + $0x1c8] sm:$0x33]
    %v1023 = vunpack.c.l.b16 %v907
    %v1024 = vunpack.c.h.b16 %v907
    %v1025 = vunpack.c.l.b16 %v908
    %v1026 = vunpack.c.h.b16 %v908
    %v1027 = vunpack.c.l.b16 %v909
    %v1028 = vunpack.c.h.b16 %v909
    %v1029 = vunpack.c.l.b16 %v910
    %v1030 = vunpack.c.h.b16 %v910
    %v1031 = vunpack.c.l.b16 %v911
    %v1032 = vunpack.c.h.b16 %v911
    %v1033 = vunpack.c.l.b16 %v912
    %v1034 = vunpack.c.h.b16 %v912
    %v1035 = vunpack.c.l.b16 %v913
    %v1036 = vunpack.c.h.b16 %v913
    %v1037 = vunpack.c.l.b16 %v914
    %v1038 = vunpack.c.h.b16 %v914
    %v1039 = vunpack.c.l.b16 %v915
    %v1040 = vunpack.c.h.b16 %v915
    %v1041 = vunpack.c.l.b16 %v916
    %v1042 = vunpack.c.h.b16 %v916
    %v1043 = vunpack.c.l.b16 %v917
    %v1044 = vunpack.c.h.b16 %v917
    %v1045 = vunpack.c.l.b16 %v918
    %v1046 = vunpack.c.h.b16 %v918
    %v1047 = vunpack.c.l.b16 %v919
    %v1048 = vunpack.c.h.b16 %v919
    %v1049 = vunpack.c.l.b16 %v920
    %v1050 = vunpack.c.h.b16 %v920
    %v1051 = vunpack.c.l.b16 %v921
    %v1052 = vunpack.c.h.b16 %v921
    %v1053 = vunpack.c.l.b16 %v922
    %v1054 = vunpack.c.h.b16 %v922
    %v1055 = vunpack.c.l.b16 %v923
    %v1056 = vunpack.c.h.b16 %v923
    %v1057 = vunpack.c.l.b16 %v924
    %v1058 = vunpack.c.h.b16 %v924
    %v1059 = vunpack.c.l.b16 %v925
    %v1060 = vunpack.c.h.b16 %v925
    %v1061 = vunpack.c.l.b16 %v926
    %v1062 = vunpack.c.h.b16 %v926
    %v1063 = vunpack.c.l.b16 %v927
    %v1064 = vunpack.c.h.b16 %v927
    %v1065 = vunpack.c.l.b16 %v928
    %v1066 = vunpack.c.h.b16 %v928
    %v1067 = vunpack.c.l.b16 %v929
    %v1068 = vunpack.c.h.b16 %v929
    %v1069 = vunpack.c.l.b16 %v930
    %v1070 = vunpack.c.h.b16 %v930
    %v1071 = vunpack.c.l.b16 %v931
    %v1072 = vunpack.c.h.b16 %v931
    %v1073 = vunpack.c.l.b16 %v932
    %v1074 = vunpack.c.h.b16 %v932
    %v1075 = vunpack.c.l.b16 %v933
    %v1076 = vunpack.c.h.b16 %v933
    %v1077 = vunpack.c.l.b16 %v934
    %v1078 = vunpack.c.h.b16 %v934
    %v1079 = vunpack.c.l.b16 %v935
    %v1080 = vunpack.c.h.b16 %v935
    %v1081 = vunpack.c.l.b16 %v936
    %v1082 = vunpack.c.h.b16 %v936
    %v1083 = vunpack.c.l.b16 %v937
    %v1084 = vunpack.c.h.b16 %v937
    %v1085 = vunpack.c.l.b16 %v938
    %v1086 = vunpack.c.h.b16 %v938
    %v1087 = vunpack.c.l.b16 %v939
    %v1088 = vunpack.c.h.b16 %v939
    %v1089 = vunpack.c.l.b16 %v940
    %v1090 = vunpack.c.h.b16 %v940
    %v1091 = vunpack.c.l.b16 %v941
    %v1092 = vunpack.c.h.b16 %v941
    %v1093 = vunpack.c.l.b16 %v942
    %v1094 = vunpack.c.h.b16 %v942
    %v1095 = vunpack.c.l.b16 %v943
    %v1096 = vunpack.c.h.b16 %v943
    %v1097 = vunpack.c.l.b16 %v944
    %v1098 = vunpack.c.h.b16 %v944
    %v1099 = vunpack.c.l.b16 %v945
    %v1100 = vunpack.c.h.b16 %v945
    %v1101 = vunpack.c.l.b16 %v946
    %v1102 = vunpack.c.h.b16 %v946
    %v1103 = vunpack.c.l.b16 %v947
    %v1104 = vunpack.c.h.b16 %v947
    %v1105 = vunpack.c.l.b16 %v948
    %v1106 = vunpack.c.h.b16 %v948
    %v1107 = vunpack.c.l.b16 %v949
    %v1108 = vunpack.c.h.b16 %v949
    %v1109 = vunpack.c.l.b16 %v950
    %v1110 = vunpack.c.h.b16 %v950
    %v1111 = vunpack.c.l.b16 %v951
    %v1112 = vunpack.c.h.b16 %v951
    %v1113 = vunpack.c.l.b16 %v952
    %v1114 = vunpack.c.h.b16 %v952
    %v1115 = vunpack.c.l.b16 %v953
    %v1116 = vunpack.c.h.b16 %v953
    %v1117 = vunpack.c.l.b16 %v954
    %v1118 = vunpack.c.h.b16 %v954
    %v1119 = vunpack.c.l.b16 %v955
    %v1120 = vunpack.c.h.b16 %v955
    %v1121 = vunpack.c.l.b16 %v956
    %v1122 = vunpack.c.h.b16 %v956
    %v1123 = vunpack.c.l.b16 %v957
    %v1124 = vunpack.c.h.b16 %v957
    %v1125 = vunpack.c.l.b16 %v958
    %v1126 = vunpack.c.h.b16 %v958
    %v1127 = vunpack.c.l.b16 %v959
    %v1128 = vunpack.c.h.b16 %v959
    %v1129 = vunpack.c.l.b16 %v960
    %v1130 = vunpack.c.h.b16 %v960
    %v1131 = vunpack.c.l.b16 %v961
    %v1132 = vunpack.c.h.b16 %v961
    %v1133 = vunpack.c.l.b16 %v962
    %v1134 = vunpack.c.h.b16 %v962
    %v1135 = vunpack.c.l.b16 %v963
    %v1136 = vunpack.c.h.b16 %v963
    %v1137 = vunpack.c.l.b16 %v964
    %v1138 = vunpack.c.h.b16 %v964
    %v1139 = vpack.c.b16 %v1025, %v1023
    %v1140 = vpack.c.b16 %v1026, %v1024
    %v1141 = vpack.c.b16 %v1029, %v1027
    %v1142 = vpack.c.b16 %v1030, %v1028
    %v1143 = vpack.c.b16 %v1033, %v1031
    %v1144 = vpack.c.b16 %v1034, %v1032
    %v1145 = vpack.c.b16 %v1037, %v1035
    %v1146 = vpack.c.b16 %v1038, %v1036
    %v1147 = vpack.c.b16 %v1041, %v1039
    %v1148 = vpack.c.b16 %v1042, %v1040
    %v1149 = vpack.c.b16 %v1045, %v1043
    %v1150 = vpack.c.b16 %v1046, %v1044
    %v1151 = vpack.c.b16 %v1049, %v1047
    %v1152 = vpack.c.b16 %v1050, %v1048
    %v1153 = vpack.c.b16 %v1053, %v1051
    %v1154 = vpack.c.b16 %v1054, %v1052
    %v1155 = vpack.c.b16 %v1057, %v1055
    %v1156 = vpack.c.b16 %v1058, %v1056
    %v1157 = vpack.c.b16 %v1061, %v1059
    %v1158 = vpack.c.b16 %v1062, %v1060
    %v1159 = vpack.c.b16 %v1065, %v1063
    %v1160 = vpack.c.b16 %v1066, %v1064
    %v1161 = vpack.c.b16 %v1069, %v1067
    %v1162 = vpack.c.b16 %v1070, %v1068
    %v1163 = vpack.c.b16 %v1073, %v1071
    %v1164 = vpack.c.b16 %v1074, %v1072
    %v1165 = vpack.c.b16 %v1077, %v1075
    %v1166 = vpack.c.b16 %v1078, %v1076
    %v1167 = vpack.c.b16 %v1081, %v1079
    %v1168 = vpack.c.b16 %v1082, %v1080
    %v1169 = vpack.c.b16 %v1085, %v1083
    %v1170 = vpack.c.b16 %v1086, %v1084
    %v1171 = vpack.c.b16 %v1089, %v1087
    %v1172 = vpack.c.b16 %v1090, %v1088
    %v1173 = vpack.c.b16 %v1093, %v1091
    %v1174 = vpack.c.b16 %v1094, %v1092
    %v1175 = vpack.c.b16 %v1097, %v1095
    %v1176 = vpack.c.b16 %v1098, %v1096
    %v1177 = vpack.c.b16 %v1101, %v1099
    %v1178 = vpack.c.b16 %v1102, %v1100
    %v1179 = vpack.c.b16 %v1105, %v1103
    %v1180 = vpack.c.b16 %v1106, %v1104
    %v1181 = vpack.c.b16 %v1109, %v1107
    %v1182 = vpack.c.b16 %v1110, %v1108
    %v1183 = vpack.c.b16 %v1113, %v1111
    %v1184 = vpack.c.b16 %v1114, %v1112
    %v1185 = vpack.c.b16 %v1117, %v1115
    %v1186 = vpack.c.b16 %v1118, %v1116
    %v1187 = vpack.c.b16 %v1121, %v1119
    %v1188 = vpack.c.b16 %v1122, %v1120
    %v1189 = vpack.c.b16 %v1125, %v1123
    %v1190 = vpack.c.b16 %v1126, %v1124
    %v1191 = vpack.c.b16 %v1129, %v1127
    %v1192 = vpack.c.b16 %v1130, %v1128
    %v1193 = vpack.c.b16 %v1133, %v1131
    %v1194 = vpack.c.b16 %v1134, %v1132
    %v1195 = vpack.c.b16 %v1137, %v1135
    %v1196 = vpack.c.b16 %v1138, %v1136
    %v1254 = vand.u32 %v1195, %v718
    %v1257 = vand.u32 %v1196, %v718
    %1259 = vmatprep.subr.bf16.mxu0 %v1140
    %1260 = vmatpush1.bf16.msra.mxu0 %v1139
    %1261 = vmatprep.subr.bf16.mxu0 %v1142
    %1262 = vmatpush1.bf16.msra.mxu0 %v1141
    %1263 = vmatprep.subr.bf16.mxu0 %v1144
    %1264 = vmatpush1.bf16.msra.mxu0 %v1143
    %1265 = vmatprep.subr.bf16.mxu0 %v1146
    %1266 = vmatpush1.bf16.msra.mxu0 %v1145
    %1267 = vmatprep.subr.bf16.mxu0 %v1148
    %1268 = vmatpush1.bf16.msra.mxu0 %v1147
    %1269 = vmatprep.subr.bf16.mxu0 %v1150
    %1270 = vmatpush1.bf16.msra.mxu0 %v1149
    %1271 = vmatprep.subr.bf16.mxu0 %v1152
    %1272 = vmatpush1.bf16.msra.mxu0 %v1151
    %1273 = vmatprep.subr.bf16.mxu0 %v1154
    %1274 = vmatpush1.bf16.msra.mxu0 %v1153
    %1275 = vmatprep.subr.bf16.mxu0 %v1156
    %1276 = vmatpush1.bf16.msra.mxu0 %v1155
    %1277 = vmatprep.subr.bf16.mxu0 %v1158
    %1278 = vmatpush1.bf16.msra.mxu0 %v1157
    %1279 = vmatprep.subr.bf16.mxu0 %v1160
    %1280 = vmatpush1.bf16.msra.mxu0 %v1159
    %1281 = vmatprep.subr.bf16.mxu0 %v1162
    %1282 = vmatpush1.bf16.msra.mxu0 %v1161
    %1283 = vmatprep.subr.bf16.mxu0 %v1164
    %1284 = vmatpush1.bf16.msra.mxu0 %v1163
    %1285 = vmatprep.subr.bf16.mxu0 %v1166
    %1286 = vmatpush1.bf16.msra.mxu0 %v1165
    %1287 = vmatprep.subr.bf16.mxu0 %v1168
    %1288 = vmatpush1.bf16.msra.mxu0 %v1167
    %1289 = vmatprep.subr.bf16.mxu0 %v1170
    %1290 = vmatpush1.bf16.msra.mxu0 %v1169
    %1291 = vmatprep.mubr.bf16.mxu0 %v417
    %1292 = vmatmul.mubr.bf16.gmra.mrb[0].mxu0 %v416
    %v1293 = vpop.f32.mrb[0].mxu0
    %v1294 = vadd.f32 0.0, %v1293
    %v1295 = vpop.f32.mrb[0].mxu0
    %v1296 = vadd.f32 0.0, %v1295
    %v1297 = vpop.f32.mrb[0].mxu0
    %v1298 = vpop.f32.mrb[0].mxu0
    %1299 = vdwg.mxu0
    %1300 = vmatprep.subr.bf16.mxu0 %v1172
    %1301 = vmatpush1.bf16.msra.mxu0 %v1171
    %1302 = vmatprep.subr.bf16.mxu0 %v1174
    %1303 = vmatpush1.bf16.msra.mxu0 %v1173
    %1304 = vmatprep.subr.bf16.mxu0 %v1176
    %1305 = vmatpush1.bf16.msra.mxu0 %v1175
    %1306 = vmatprep.subr.bf16.mxu0 %v1178
    %1307 = vmatpush1.bf16.msra.mxu0 %v1177
    %1308 = vmatprep.subr.bf16.mxu0 %v1180
    %1309 = vmatpush1.bf16.msra.mxu0 %v1179
    %1310 = vmatprep.subr.bf16.mxu0 %v1182
    %1311 = vmatpush1.bf16.msra.mxu0 %v1181
    %1312 = vmatprep.subr.bf16.mxu0 %v1184
    %1313 = vmatpush1.bf16.msra.mxu0 %v1183
    %1314 = vmatprep.subr.bf16.mxu0 %v1186
    %1315 = vmatpush1.bf16.msra.mxu0 %v1185
    %1316 = vmatprep.subr.bf16.mxu0 %v1188
    %1317 = vmatpush1.bf16.msra.mxu0 %v1187
    %1318 = vmatprep.subr.bf16.mxu0 %v1190
    %1319 = vmatpush1.bf16.msra.mxu0 %v1189
    %1320 = vmatprep.subr.bf16.mxu0 %v1192
    %1321 = vmatpush1.bf16.msra.mxu0 %v1191
    %1322 = vmatprep.subr.bf16.mxu0 %v1194
    %1323 = vmatpush1.bf16.msra.mxu0 %v1193
    %1324 = vmatprep.subr.bf16.mxu0 %v1257
    %1325 = vmatpush1.bf16.msra.mxu0 %v1254
    %1326 = vmatprep.subr.bf16.mxu0 0
    %1327 = vmatpush1.bf16.msra.mxu0 0
    %1328 = vmatprep.subr.bf16.mxu0 0
    %1329 = vmatpush1.bf16.msra.mxu0 0
    %1330 = vmatprep.subr.bf16.mxu0 0
    %1331 = vmatpush1.bf16.msra.mxu0 0
    %1332 = vmatprep.mubr.bf16.mxu0 %v713
    %1333 = vmatmul.mubr.bf16.gmra.mrb[0].mxu0 %v418
    %v1334 = vpop.f32.mrb[0].mxu0
    %v1335 = vadd.f32 %v1294, %v1334
    %v1336 = vpop.f32.mrb[0].mxu0
    %v1337 = vadd.f32 %v1296, %v1336
    %v1338 = vpop.f32.mrb[0].mxu0
    %v1339 = vpop.f32.mrb[0].mxu0
    %1340 = vdwg.mxu0
    %v1341 = vadd.f32 %v904, %v1335
    %v1342 = vadd.f32 %v905, %v1337
    %s1343 = scalar_lea.vmem %s3, 2
    %v1344 = vld [vmem:[%s1343] ss:$4 sm:$0x3]
    %s1345 = scalar_lea.vmem %s4, 64
    %v1346 = vld [vmem:[%s1345] sm:$0xff]
    %v1347 = vld [vmem:[%s1345 + $0x8] sm:$0xff]
    %v1348 = vld [vmem:[%s1345 + $0x10] sm:$0x3]
    %v1349 = vld [vmem:[%s1345 + $0x18] sm:$0x3]
    %v1351 = vsel %vm261, %v1348, 0
    %v1354 = vsel %vm261, %v1349, 0
    %1356 = vmatprep.subr.mxu0 %v1347
    %1357 = vmatpush1.msra.mxu0 %v1346
    %1358 = vmatprep.subr.mxu0 %v1354
    %1359 = vmatpush1.msra.mxu0 %v1351
    %1360 = vmatprep.subr.mxu0 0.0
    %1361 = vmatpush1.msra.mxu0 0.0
    %1362 = vmatprep.subr.mxu0 0.0
    %1363 = vmatpush1.msra.mxu0 0.0
    %1364 = vmatprep.subr.mxu0 0.0
    %1365 = vmatpush1.msra.mxu0 0.0
    %1366 = vmatprep.subr.mxu0 0.0
    %1367 = vmatpush1.msra.mxu0 0.0
    %1368 = vmatprep.subr.mxu0 0.0
    %1369 = vmatpush1.msra.mxu0 0.0
    %1370 = vmatprep.subr.mxu0 0.0
    %1371 = vmatpush1.msra.mxu0 0.0
    %1372 = vmatprep.subr.mxu0 0.0
    %1373 = vmatpush1.msra.mxu0 0.0
    %1374 = vmatprep.subr.mxu0 0.0
    %1375 = vmatpush1.msra.mxu0 0.0
    %1376 = vmatprep.subr.mxu0 0.0
    %1377 = vmatpush1.msra.mxu0 0.0
    %1378 = vmatprep.subr.mxu0 0.0
    %1379 = vmatpush1.msra.mxu0 0.0
    %1380 = vmatprep.subr.mxu0 0.0
    %1381 = vmatpush1.msra.mxu0 0.0
    %1382 = vmatprep.subr.mxu0 0.0
    %1383 = vmatpush1.msra.mxu0 0.0
    %1384 = vmatprep.subr.mxu0 0.0
    %1385 = vmatpush1.msra.mxu0 0.0
    %1386 = vmatprep.subr.mxu0 0.0
    %1387 = vmatpush1.msra.mxu0 0.0
    %1388 = vmatprep.subr.mxu0 0.0
    %1389 = vmatpush1.msra.mxu0 0.0
    %1390 = vmatprep.subr.mxu0 0.0
    %1391 = vmatpush1.msra.mxu0 0.0
    %1392 = vmatprep.subr.mxu0 0.0
    %1393 = vmatpush1.msra.mxu0 0.0
    %1394 = vmatprep.subr.mxu0 0.0
    %1395 = vmatpush1.msra.mxu0 0.0
    %1396 = vmatprep.subr.mxu0 0.0
    %1397 = vmatpush1.msra.mxu0 0.0
    %1398 = vmatprep.subr.mxu0 0.0
    %1399 = vmatpush1.msra.mxu0 0.0
    %1400 = vmatprep.subr.mxu0 0.0
    %1401 = vmatpush1.msra.mxu0 0.0
    %1402 = vmatprep.subr.mxu0 0.0
    %1403 = vmatpush1.msra.mxu0 0.0
    %1404 = vmatprep.subr.mxu0 0.0
    %1405 = vmatpush1.msra.mxu0 0.0
    %1406 = vmatprep.subr.mxu0 0.0
    %1407 = vmatpush1.msra.mxu0 0.0
    %1408 = vmatprep.subr.mxu0 0.0
    %1409 = vmatpush1.msra.mxu0 0.0
    %1410 = vmatprep.subr.mxu0 0.0
    %1411 = vmatpush1.msra.mxu0 0.0
    %1412 = vmatprep.subr.mxu0 0.0
    %1413 = vmatpush1.msra.mxu0 0.0
    %1414 = vmatprep.subr.mxu0 0.0
    %1415 = vmatpush1.msra.mxu0 0.0
    %1416 = vmatprep.subr.mxu0 0.0
    %1417 = vmatpush1.msra.mxu0 0.0
    %1418 = vmatprep.subr.mxu0 0.0
    %1419 = vmatpush1.msra.mxu0 0.0
    %1420 = vmatprep.mubr.f32.mxu0 0.0
    %1421 = vmatmul.mubr.f32.gmra.mrb[0].mxu0 %v259
    %v1422 = vpop.f32.mrb[0].mxu0
    %v1423 = vadd.f32 0.0, %v1422
    %v1424 = vpop.f32.mrb[0].mxu0
    %v1425 = vadd.f32 0.0, %v1424
    %1426 = vdwg.mxu0
    %v1428 = vlaneseq
    %v1429 = vshrl.u32 %v1428, 7
    %v1430 = vsub.s32 0, %v1429
    %v1431 = vrot.slane %v1344, %v1430
    %v1432 = vlaneseq
    %v1433 = vshrl.u32 %v1432, 7
    %v1434 = vsub.s32 1, %v1433
    %v1435 = vrot.slane %v1344, %v1434
    %v1438 = vadd.f32 %v1431, %v1423
    %v1439 = vadd.f32 %v1435, %v1425
    %s1440 = scalar_lea.vmem [#allocation2], 928
    %v1441 = vld [vmem:[%s1440] sm:$0xff]
    %v1442 = vld [vmem:[%s1440 + $0x8] sm:$0xff]
    %v1443 = vld [vmem:[%s1440 + $0x10] sm:$0xff]
    %v1444 = vld [vmem:[%s1440 + $0x18] sm:$0xff]
    %v1445 = vld [vmem:[%s1440 + $0x20] sm:$0xff]
    %v1446 = vld [vmem:[%s1440 + $0x28] sm:$0xff]
    %v1447 = vld [vmem:[%s1440 + $0x30] sm:$0xff]
    %v1448 = vld [vmem:[%s1440 + $0x38] sm:$0xff]
    %v1449 = vld [vmem:[%s1440 + $0x40] sm:$0xff]
    %v1450 = vld [vmem:[%s1440 + $0x48] sm:$0xff]
    %v1451 = vld [vmem:[%s1440 + $0x50] sm:$0xff]
    %v1452 = vld [vmem:[%s1440 + $0x58] sm:$0xff]
    %v1453 = vld [vmem:[%s1440 + $0x60] sm:$0xff]
    %v1454 = vld [vmem:[%s1440 + $0x68] sm:$0xff]
    %v1455 = vld [vmem:[%s1440 + $0x70] sm:$0xff]
    %v1456 = vld [vmem:[%s1440 + $0x78] sm:$0xff]
    %v1457 = vld [vmem:[%s1440 + $0x80] sm:$0xff]
    %v1458 = vld [vmem:[%s1440 + $0x88] sm:$0xff]
    %v1459 = vld [vmem:[%s1440 + $0x90] sm:$0xff]
    %v1460 = vld [vmem:[%s1440 + $0x98] sm:$0xff]
    %v1461 = vld [vmem:[%s1440 + $0xa0] sm:$0xff]
    %v1462 = vld [vmem:[%s1440 + $0xa8] sm:$0xff]
    %v1463 = vld [vmem:[%s1440 + $0xb0] sm:$0xff]
    %v1464 = vld [vmem:[%s1440 + $0xb8] sm:$0xff]
    %v1465 = vld [vmem:[%s1440 + $0xc0] sm:$0xff]
    %v1466 = vld [vmem:[%s1440 + $0xc8] sm:$0xff]
    %v1467 = vld [vmem:[%s1440 + $0xd0] sm:$0xff]
    %v1468 = vld [vmem:[%s1440 + $0xd8] sm:$0xff]
    %v1469 = vld [vmem:[%s1440 + $0xe0] sm:$0xff]
    %v1470 = vld [vmem:[%s1440 + $0xe8] sm:$0xff]
    %v1471 = vld [vmem:[%s1440 + $0xf0] sm:$0xff]
    %v1472 = vld [vmem:[%s1440 + $0xf8] sm:$0xff]
    %v1473 = vld [vmem:[%s1440 + $0x100] sm:$0xff]
    %v1474 = vld [vmem:[%s1440 + $0x108] sm:$0xff]
    %v1475 = vld [vmem:[%s1440 + $0x110] sm:$0xff]
    %v1476 = vld [vmem:[%s1440 + $0x118] sm:$0xff]
    %v1477 = vld [vmem:[%s1440 + $0x120] sm:$0xff]
    %v1478 = vld [vmem:[%s1440 + $0x128] sm:$0xff]
    %v1479 = vld [vmem:[%s1440 + $0x130] sm:$0xff]
    %v1480 = vld [vmem:[%s1440 + $0x138] sm:$0xff]
    %v1481 = vld [vmem:[%s1440 + $0x140] sm:$0xff]
    %v1482 = vld [vmem:[%s1440 + $0x148] sm:$0xff]
    %v1483 = vld [vmem:[%s1440 + $0x150] sm:$0xff]
    %v1484 = vld [vmem:[%s1440 + $0x158] sm:$0xff]
    %v1485 = vld [vmem:[%s1440 + $0x160] sm:$0xff]
    %v1486 = vld [vmem:[%s1440 + $0x168] sm:$0xff]
    %v1487 = vld [vmem:[%s1440 + $0x170] sm:$0xff]
    %v1488 = vld [vmem:[%s1440 + $0x178] sm:$0xff]
    %v1489 = vld [vmem:[%s1440 + $0x180] sm:$0xff]
    %v1490 = vld [vmem:[%s1440 + $0x188] sm:$0xff]
    %v1491 = vld [vmem:[%s1440 + $0x190] sm:$0xff]
    %v1492 = vld [vmem:[%s1440 + $0x198] sm:$0xff]
    %v1493 = vld [vmem:[%s1440 + $0x1a0] sm:$0xff]
    %v1494 = vld [vmem:[%s1440 + $0x1a8] sm:$0xff]
    %v1495 = vld [vmem:[%s1440 + $0x1b0] sm:$0xff]
    %v1496 = vld [vmem:[%s1440 + $0x1b8] sm:$0xff]
    %v1497 = vld [vmem:[%s1440 + $0x1c0] sm:$0xff]
    %v1498 = vld [vmem:[%s1440 + $0x1c8] sm:$0x33]
    %v1557 = vunpack.c.l.b16 %v1441
    %v1558 = vunpack.c.h.b16 %v1441
    %v1559 = vunpack.c.l.b16 %v1442
    %v1560 = vunpack.c.h.b16 %v1442
    %v1561 = vunpack.c.l.b16 %v1443
    %v1562 = vunpack.c.h.b16 %v1443
    %v1563 = vunpack.c.l.b16 %v1444
    %v1564 = vunpack.c.h.b16 %v1444
    %v1565 = vunpack.c.l.b16 %v1445
    %v1566 = vunpack.c.h.b16 %v1445
    %v1567 = vunpack.c.l.b16 %v1446
    %v1568 = vunpack.c.h.b16 %v1446
    %v1569 = vunpack.c.l.b16 %v1447
    %v1570 = vunpack.c.h.b16 %v1447
    %v1571 = vunpack.c.l.b16 %v1448
    %v1572 = vunpack.c.h.b16 %v1448
    %v1573 = vunpack.c.l.b16 %v1449
    %v1574 = vunpack.c.h.b16 %v1449
    %v1575 = vunpack.c.l.b16 %v1450
    %v1576 = vunpack.c.h.b16 %v1450
    %v1577 = vunpack.c.l.b16 %v1451
    %v1578 = vunpack.c.h.b16 %v1451
    %v1579 = vunpack.c.l.b16 %v1452
    %v1580 = vunpack.c.h.b16 %v1452
    %v1581 = vunpack.c.l.b16 %v1453
    %v1582 = vunpack.c.h.b16 %v1453
    %v1583 = vunpack.c.l.b16 %v1454
    %v1584 = vunpack.c.h.b16 %v1454
    %v1585 = vunpack.c.l.b16 %v1455
    %v1586 = vunpack.c.h.b16 %v1455
    %v1587 = vunpack.c.l.b16 %v1456
    %v1588 = vunpack.c.h.b16 %v1456
    %v1589 = vunpack.c.l.b16 %v1457
    %v1590 = vunpack.c.h.b16 %v1457
    %v1591 = vunpack.c.l.b16 %v1458
    %v1592 = vunpack.c.h.b16 %v1458
    %v1593 = vunpack.c.l.b16 %v1459
    %v1594 = vunpack.c.h.b16 %v1459
    %v1595 = vunpack.c.l.b16 %v1460
    %v1596 = vunpack.c.h.b16 %v1460
    %v1597 = vunpack.c.l.b16 %v1461
    %v1598 = vunpack.c.h.b16 %v1461
    %v1599 = vunpack.c.l.b16 %v1462
    %v1600 = vunpack.c.h.b16 %v1462
    %v1601 = vunpack.c.l.b16 %v1463
    %v1602 = vunpack.c.h.b16 %v1463
    %v1603 = vunpack.c.l.b16 %v1464
    %v1604 = vunpack.c.h.b16 %v1464
    %v1605 = vunpack.c.l.b16 %v1465
    %v1606 = vunpack.c.h.b16 %v1465
    %v1607 = vunpack.c.l.b16 %v1466
    %v1608 = vunpack.c.h.b16 %v1466
    %v1609 = vunpack.c.l.b16 %v1467
    %v1610 = vunpack.c.h.b16 %v1467
    %v1611 = vunpack.c.l.b16 %v1468
    %v1612 = vunpack.c.h.b16 %v1468
    %v1613 = vunpack.c.l.b16 %v1469
    %v1614 = vunpack.c.h.b16 %v1469
    %v1615 = vunpack.c.l.b16 %v1470
    %v1616 = vunpack.c.h.b16 %v1470
    %v1617 = vunpack.c.l.b16 %v1471
    %v1618 = vunpack.c.h.b16 %v1471
    %v1619 = vunpack.c.l.b16 %v1472
    %v1620 = vunpack.c.h.b16 %v1472
    %v1621 = vunpack.c.l.b16 %v1473
    %v1622 = vunpack.c.h.b16 %v1473
    %v1623 = vunpack.c.l.b16 %v1474
    %v1624 = vunpack.c.h.b16 %v1474
    %v1625 = vunpack.c.l.b16 %v1475
    %v1626 = vunpack.c.h.b16 %v1475
    %v1627 = vunpack.c.l.b16 %v1476
    %v1628 = vunpack.c.h.b16 %v1476
    %v1629 = vunpack.c.l.b16 %v1477
    %v1630 = vunpack.c.h.b16 %v1477
    %v1631 = vunpack.c.l.b16 %v1478
    %v1632 = vunpack.c.h.b16 %v1478
    %v1633 = vunpack.c.l.b16 %v1479
    %v1634 = vunpack.c.h.b16 %v1479
    %v1635 = vunpack.c.l.b16 %v1480
    %v1636 = vunpack.c.h.b16 %v1480
    %v1637 = vunpack.c.l.b16 %v1481
    %v1638 = vunpack.c.h.b16 %v1481
    %v1639 = vunpack.c.l.b16 %v1482
    %v1640 = vunpack.c.h.b16 %v1482
    %v1641 = vunpack.c.l.b16 %v1483
    %v1642 = vunpack.c.h.b16 %v1483
    %v1643 = vunpack.c.l.b16 %v1484
    %v1644 = vunpack.c.h.b16 %v1484
    %v1645 = vunpack.c.l.b16 %v1485
    %v1646 = vunpack.c.h.b16 %v1485
    %v1647 = vunpack.c.l.b16 %v1486
    %v1648 = vunpack.c.h.b16 %v1486
    %v1649 = vunpack.c.l.b16 %v1487
    %v1650 = vunpack.c.h.b16 %v1487
    %v1651 = vunpack.c.l.b16 %v1488
    %v1652 = vunpack.c.h.b16 %v1488
    %v1653 = vunpack.c.l.b16 %v1489
    %v1654 = vunpack.c.h.b16 %v1489
    %v1655 = vunpack.c.l.b16 %v1490
    %v1656 = vunpack.c.h.b16 %v1490
    %v1657 = vunpack.c.l.b16 %v1491
    %v1658 = vunpack.c.h.b16 %v1491
    %v1659 = vunpack.c.l.b16 %v1492
    %v1660 = vunpack.c.h.b16 %v1492
    %v1661 = vunpack.c.l.b16 %v1493
    %v1662 = vunpack.c.h.b16 %v1493
    %v1663 = vunpack.c.l.b16 %v1494
    %v1664 = vunpack.c.h.b16 %v1494
    %v1665 = vunpack.c.l.b16 %v1495
    %v1666 = vunpack.c.h.b16 %v1495
    %v1667 = vunpack.c.l.b16 %v1496
    %v1668 = vunpack.c.h.b16 %v1496
    %v1669 = vunpack.c.l.b16 %v1497
    %v1670 = vunpack.c.h.b16 %v1497
    %v1671 = vunpack.c.l.b16 %v1498
    %v1672 = vunpack.c.h.b16 %v1498
    %v1673 = vpack.c.b16 %v1559, %v1557
    %v1674 = vpack.c.b16 %v1560, %v1558
    %v1675 = vpack.c.b16 %v1563, %v1561
    %v1676 = vpack.c.b16 %v1564, %v1562
    %v1677 = vpack.c.b16 %v1567, %v1565
    %v1678 = vpack.c.b16 %v1568, %v1566
    %v1679 = vpack.c.b16 %v1571, %v1569
    %v1680 = vpack.c.b16 %v1572, %v1570
    %v1681 = vpack.c.b16 %v1575, %v1573
    %v1682 = vpack.c.b16 %v1576, %v1574
    %v1683 = vpack.c.b16 %v1579, %v1577
    %v1684 = vpack.c.b16 %v1580, %v1578
    %v1685 = vpack.c.b16 %v1583, %v1581
    %v1686 = vpack.c.b16 %v1584, %v1582
    %v1687 = vpack.c.b16 %v1587, %v1585
    %v1688 = vpack.c.b16 %v1588, %v1586
    %v1689 = vpack.c.b16 %v1591, %v1589
    %v1690 = vpack.c.b16 %v1592, %v1590
    %v1691 = vpack.c.b16 %v1595, %v1593
    %v1692 = vpack.c.b16 %v1596, %v1594
    %v1693 = vpack.c.b16 %v1599, %v1597
    %v1694 = vpack.c.b16 %v1600, %v1598
    %v1695 = vpack.c.b16 %v1603, %v1601
    %v1696 = vpack.c.b16 %v1604, %v1602
    %v1697 = vpack.c.b16 %v1607, %v1605
    %v1698 = vpack.c.b16 %v1608, %v1606
    %v1699 = vpack.c.b16 %v1611, %v1609
    %v1700 = vpack.c.b16 %v1612, %v1610
    %v1701 = vpack.c.b16 %v1615, %v1613
    %v1702 = vpack.c.b16 %v1616, %v1614
    %v1703 = vpack.c.b16 %v1619, %v1617
    %v1704 = vpack.c.b16 %v1620, %v1618
    %v1705 = vpack.c.b16 %v1623, %v1621
    %v1706 = vpack.c.b16 %v1624, %v1622
    %v1707 = vpack.c.b16 %v1627, %v1625
    %v1708 = vpack.c.b16 %v1628, %v1626
    %v1709 = vpack.c.b16 %v1631, %v1629
    %v1710 = vpack.c.b16 %v1632, %v1630
    %v1711 = vpack.c.b16 %v1635, %v1633
    %v1712 = vpack.c.b16 %v1636, %v1634
    %v1713 = vpack.c.b16 %v1639, %v1637
    %v1714 = vpack.c.b16 %v1640, %v1638
    %v1715 = vpack.c.b16 %v1643, %v1641
    %v1716 = vpack.c.b16 %v1644, %v1642
    %v1717 = vpack.c.b16 %v1647, %v1645
    %v1718 = vpack.c.b16 %v1648, %v1646
    %v1719 = vpack.c.b16 %v1651, %v1649
    %v1720 = vpack.c.b16 %v1652, %v1650
    %v1721 = vpack.c.b16 %v1655, %v1653
    %v1722 = vpack.c.b16 %v1656, %v1654
    %v1723 = vpack.c.b16 %v1659, %v1657
    %v1724 = vpack.c.b16 %v1660, %v1658
    %v1725 = vpack.c.b16 %v1663, %v1661
    %v1726 = vpack.c.b16 %v1664, %v1662
    %v1727 = vpack.c.b16 %v1667, %v1665
    %v1728 = vpack.c.b16 %v1668, %v1666
    %v1729 = vpack.c.b16 %v1671, %v1669
    %v1730 = vpack.c.b16 %v1672, %v1670
    %v1788 = vand.u32 %v1729, %v718
    %v1791 = vand.u32 %v1730, %v718
    %1793 = vmatprep.subr.bf16.mxu0 %v1674
    %1794 = vmatpush1.bf16.msra.mxu0 %v1673
    %1795 = vmatprep.subr.bf16.mxu0 %v1676
    %1796 = vmatpush1.bf16.msra.mxu0 %v1675
    %1797 = vmatprep.subr.bf16.mxu0 %v1678
    %1798 = vmatpush1.bf16.msra.mxu0 %v1677
    %1799 = vmatprep.subr.bf16.mxu0 %v1680
    %1800 = vmatpush1.bf16.msra.mxu0 %v1679
    %1801 = vmatprep.subr.bf16.mxu0 %v1682
    %1802 = vmatpush1.bf16.msra.mxu0 %v1681
    %1803 = vmatprep.subr.bf16.mxu0 %v1684
    %1804 = vmatpush1.bf16.msra.mxu0 %v1683
    %1805 = vmatprep.subr.bf16.mxu0 %v1686
    %1806 = vmatpush1.bf16.msra.mxu0 %v1685
    %1807 = vmatprep.subr.bf16.mxu0 %v1688
    %1808 = vmatpush1.bf16.msra.mxu0 %v1687
    %1809 = vmatprep.subr.bf16.mxu0 %v1690
    %1810 = vmatpush1.bf16.msra.mxu0 %v1689
    %1811 = vmatprep.subr.bf16.mxu0 %v1692
    %1812 = vmatpush1.bf16.msra.mxu0 %v1691
    %1813 = vmatprep.subr.bf16.mxu0 %v1694
    %1814 = vmatpush1.bf16.msra.mxu0 %v1693
    %1815 = vmatprep.subr.bf16.mxu0 %v1696
    %1816 = vmatpush1.bf16.msra.mxu0 %v1695
    %1817 = vmatprep.subr.bf16.mxu0 %v1698
    %1818 = vmatpush1.bf16.msra.mxu0 %v1697
    %1819 = vmatprep.subr.bf16.mxu0 %v1700
    %1820 = vmatpush1.bf16.msra.mxu0 %v1699
    %1821 = vmatprep.subr.bf16.mxu0 %v1702
    %1822 = vmatpush1.bf16.msra.mxu0 %v1701
    %1823 = vmatprep.subr.bf16.mxu0 %v1704
    %1824 = vmatpush1.bf16.msra.mxu0 %v1703
    %1825 = vmatprep.mubr.bf16.mxu0 %v417
    %1826 = vmatmul.mubr.bf16.gmra.mrb[0].mxu0 %v416
    %v1827 = vpop.f32.mrb[0].mxu0
    %v1828 = vadd.f32 0.0, %v1827
    %v1829 = vpop.f32.mrb[0].mxu0
    %v1830 = vadd.f32 0.0, %v1829
    %v1831 = vpop.f32.mrb[0].mxu0
    %v1832 = vpop.f32.mrb[0].mxu0
    %1833 = vdwg.mxu0
    %1834 = vmatprep.subr.bf16.mxu0 %v1706
    %1835 = vmatpush1.bf16.msra.mxu0 %v1705
    %1836 = vmatprep.subr.bf16.mxu0 %v1708
    %1837 = vmatpush1.bf16.msra.mxu0 %v1707
    %1838 = vmatprep.subr.bf16.mxu0 %v1710
    %1839 = vmatpush1.bf16.msra.mxu0 %v1709
    %1840 = vmatprep.subr.bf16.mxu0 %v1712
    %1841 = vmatpush1.bf16.msra.mxu0 %v1711
    %1842 = vmatprep.subr.bf16.mxu0 %v1714
    %1843 = vmatpush1.bf16.msra.mxu0 %v1713
    %1844 = vmatprep.subr.bf16.mxu0 %v1716
    %1845 = vmatpush1.bf16.msra.mxu0 %v1715
    %1846 = vmatprep.subr.bf16.mxu0 %v1718
    %1847 = vmatpush1.bf16.msra.mxu0 %v1717
    %1848 = vmatprep.subr.bf16.mxu0 %v1720
    %1849 = vmatpush1.bf16.msra.mxu0 %v1719
    %1850 = vmatprep.subr.bf16.mxu0 %v1722
    %1851 = vmatpush1.bf16.msra.mxu0 %v1721
    %1852 = vmatprep.subr.bf16.mxu0 %v1724
    %1853 = vmatpush1.bf16.msra.mxu0 %v1723
    %1854 = vmatprep.subr.bf16.mxu0 %v1726
    %1855 = vmatpush1.bf16.msra.mxu0 %v1725
    %1856 = vmatprep.subr.bf16.mxu0 %v1728
    %1857 = vmatpush1.bf16.msra.mxu0 %v1727
    %1858 = vmatprep.subr.bf16.mxu0 %v1791
    %1859 = vmatpush1.bf16.msra.mxu0 %v1788
    %1860 = vmatprep.subr.bf16.mxu0 0
    %1861 = vmatpush1.bf16.msra.mxu0 0
    %1862 = vmatprep.subr.bf16.mxu0 0
    %1863 = vmatpush1.bf16.msra.mxu0 0
    %1864 = vmatprep.subr.bf16.mxu0 0
    %1865 = vmatpush1.bf16.msra.mxu0 0
    %1866 = vmatprep.mubr.bf16.mxu0 %v713
    %1867 = vmatmul.mubr.bf16.gmra.mrb[0].mxu0 %v418
    %v1868 = vpop.f32.mrb[0].mxu0
    %v1869 = vadd.f32 %v1828, %v1868
    %v1870 = vpop.f32.mrb[0].mxu0
    %v1871 = vadd.f32 %v1830, %v1870
    %v1872 = vpop.f32.mrb[0].mxu0
    %v1873 = vpop.f32.mrb[0].mxu0
    %1874 = vdwg.mxu0
    %v1875 = vadd.f32 %v1438, %v1869
    %v1876 = vadd.f32 %v1439, %v1871
    %v1877 = vmul.f32 %v182, %v807
    %v1878 = vmul.f32 %v184, %v808
    %v1879 = vmul.f32 %v188, %v1341
    %v1880 = vmul.f32 %v190, %v1342
    %v1881 = vadd.f32 %v1877, %v1879
    %v1882 = vadd.f32 %v1878, %v1880
    %v1883 = vmul.f32 %v194, %v1875
    %v1884 = vmul.f32 %v196, %v1876
    %v1885 = vadd.f32 %v1881, %v1883
    %v1886 = vadd.f32 %v1882, %v1884
    %v1887 = vadd.f32 %v1885, %v200
    %v1888 = vadd.f32 %v1886, %v202
    %1889 = vst [vmem:[#allocation5] sm:$0xff] %v1887
    %1890 = vst [vmem:[#allocation5 + $0x8] sm:$0xff] %v1888
    %v1891 = vmul.f32 %v206, %v807
    %v1892 = vmul.f32 %v208, %v808
    %v1893 = vmul.f32 %v212, %v1341
    %v1894 = vmul.f32 %v214, %v1342
    %v1895 = vadd.f32 %v1891, %v1893
    %v1896 = vadd.f32 %v1892, %v1894
    %v1897 = vmul.f32 %v218, %v1875
    %v1898 = vmul.f32 %v220, %v1876
    %v1899 = vadd.f32 %v1895, %v1897
    %v1900 = vadd.f32 %v1896, %v1898
    %v1901 = vadd.f32 %v1899, %v224
    %v1902 = vadd.f32 %v1900, %v226
    %s1903 = scalar_lea.vmem [#allocation5], 16
    %1904 = vst [vmem:[%s1903] sm:$0xff] %v1901
    %1905 = vst [vmem:[%s1903 + $0x8] sm:$0xff] %v1902
    %v1906 = vmul.f32 %v230, %v807
    %v1907 = vmul.f32 %v232, %v808
    %v1908 = vmul.f32 %v236, %v1341
    %v1909 = vmul.f32 %v238, %v1342
    %v1910 = vadd.f32 %v1906, %v1908
    %v1911 = vadd.f32 %v1907, %v1909
    %v1912 = vmul.f32 %v242, %v1875
    %v1913 = vmul.f32 %v244, %v1876
    %v1914 = vadd.f32 %v1910, %v1912
    %v1915 = vadd.f32 %v1911, %v1913
    %v1916 = vadd.f32 %v1914, %v248
    %v1917 = vadd.f32 %v1915, %v250
    %s1918 = scalar_lea.vmem [#allocation5], 32
    %1919 = vst [vmem:[%s1918] sm:$0xff] %v1916
    %1920 = vst [vmem:[%s1918 + $0x8] sm:$0xff] %v1917
    // Predicated region
    $region34: #{tpu_custom_call.1} parent=1 // pred_check
      _
    $region35: #{tpu_custom_call.1} parent=1 // pred_check_branch
      %1922 = sbr.rel (0) target = $region37
    $region36: #{tpu_custom_call.1} parent=1 // pred_region
      %s1924 = ssub.s32 768, 768
      %1925 = vsyncadd [#allocation4], %s1924
      %s1926 = sshll.u32 [#allocation5], 4
      %s1927 = int_to_ptr.vmem [resolvable:$true] %s1926
      %1932 = dma.vmem_to_hbm [thread:$0]  %s1927, 768, %s7, [#allocation4], 256, 256, 16
    $region37: #{tpu_custom_call.1} parent=1 // pred_fallthru
      _
    // Predicated region
    $region38: #{tpu_custom_call.1} parent=1 // pred_check
      _
    $region39: #{tpu_custom_call.1} parent=1 // pred_check_branch
      %1934 = sbr.rel (0) target = $region41
    $region40: #{tpu_custom_call.1} parent=1 // pred_region
      %1935 = dma.done [#allocation4], 768
    $region41: #{tpu_custom_call.1} parent=1 // pred_fallthru
      _
    %1936 = vsyncpa [#allocation3], 1
    %1937 = vsyncpa [#allocation4], 1

</llo_original>
